<compile_context>
chip_gen: v7x
topology: tpu7x:2x2x1
jax: 0.10.0
libtpu: 0.0.40
codegen_flags: <defaults>
</compile_context>

<pallas_src>
import jax
import jax.numpy as jnp
from jax import lax
from jax.experimental import pallas as pl
from jax.experimental.pallas import tpu as pltpu


def _edge_mlp_kernel(x_ref, bid_ref, uw_ref, w1_ref, w2_ref, bias_ref, o_ref):
    f32 = jnp.float32
    bf16 = jnp.bfloat16

    # ---- Linear1 on the concatenated (src|dest|edge_attr) chunk, BN1 scale folded.
    h = jnp.dot(x_ref[...], w1_ref[...], preferred_element_type=f32)   # bf16 x bf16 -> f32

    # ---- u[batch] @ W1_u, pre-folded wrapper-side to uw[B, d_out]; gathered here
    #      with a bf16 one-hot matmul (exact row select, f32 accumulation).
    bid = bid_ref[...]                                                  # [tile_e, 1] int32
    n_graphs = uw_ref.shape[0]
    onehot = (bid == lax.broadcasted_iota(
        jnp.int32, (bid.shape[0], n_graphs), 1)).astype(bf16)           # [tile_e, B]
    h += jnp.dot(onehot, uw_ref[...], preferred_element_type=f32)

    # ---- BN1 shift + ReLU
    h = jnp.maximum(h + bias_ref[0:1, :], 0.0)

    # ---- Linear2 (BN2 scale folded, K = d_out, un-padded) + BN2 shift
    y = jnp.dot(h.astype(bf16), w2_ref[...], preferred_element_type=f32)
    o_ref[...] = (y + bias_ref[1:2, :]).astype(o_ref.dtype)


def edge_model_forward(src, dest, edge_attr, u, batch, params, *, tile_e=1024):
    """EdgeModel forward. src/dest: [E, Fn], edge_attr: [E, Fe], u: [B, Fg], batch: [E] int."""
    E, fn = src.shape
    fe = edge_attr.shape[1]
    B, fg = u.shape
    d_out = params["w1"].shape[1]
    eps = 1e-5
    bf16 = jnp.bfloat16

    # ---- fold BatchNorm (eval mode) into per-feature scale/shift; fold the scale
    #      into the weight columns (one-time wrapper-side weight transform).
    def fold(gamma, beta, mean, var):
        scale = gamma / jnp.sqrt(var + eps)
        return scale, beta - mean * scale

    s1, b1 = fold(params["bn1_w"], params["bn1_b"], params["bn1_mean"], params["bn1_var"])
    s2, b2 = fold(params["bn2_w"], params["bn2_b"], params["bn2_mean"], params["bn2_var"])
    w1 = params["w1"] * s1[None, :]                        # [D_in, d_out], BN1 scale folded
    w2 = params["w2"] * s2[None, :]                        # [d_out, d_out], BN2 scale folded

    # ---- split W1 into the (src|dest|edge_attr) block and the u block; fold the
    #      u block through u wrapper-side -> per-graph contribution table.
    d_cat = 2 * fn + fe
    w1_cat = w1[:d_cat]                                    # [d_cat, d_out]
    w1_u = w1[d_cat:]                                      # [fg, d_out]
    uw = u.astype(jnp.float32) @ w1_u                      # [B, d_out] (tiny)

    # ---- pack operands (matmul inputs in bf16; shifts stay f32).
    x_cat = jnp.concatenate([src, dest, edge_attr], axis=1).astype(bf16)   # [E, d_cat]
    w1_cat_b = w1_cat.astype(bf16)
    w2_b = w2.astype(bf16)
    uw_b = uw.astype(bf16)
    bias = jnp.stack([b1, b2]).astype(jnp.float32)          # [2, d_out]
    batch2d = batch.reshape(E, 1).astype(jnp.int32)

    # ---- tile sizing: multiple of 8, and at least 2 grid steps so both v7x
    #      TensorCores get work for small/medium E.
    half = -(-E // 2)
    half8 = max(8, ((half + 7) // 8) * 8)
    tile_e = max(8, min(tile_e, half8))
    grid = (pl.cdiv(E, tile_e),)

    edge_spec = lambda f: pl.BlockSpec((tile_e, f), lambda i: (i, 0))
    const_spec = lambda shp: pl.BlockSpec(shp, lambda i: (0, 0))

    out = pl.pallas_call(
        _edge_mlp_kernel,
        out_shape=jax.ShapeDtypeStruct((E, d_out), jnp.float32),
        grid=grid,
        in_specs=[
            edge_spec(d_cat),              # x_cat = (src|dest|edge_attr), bf16
            edge_spec(1),                  # batch ids, int32
            const_spec((B, d_out)),        # uw = u @ W1_u (per-graph), bf16
            const_spec((d_cat, d_out)),    # W1 block for x_cat, bf16
            const_spec((d_out, d_out)),    # W2, bf16 (un-padded contraction)
            const_spec((2, d_out)),        # [b1; b2] shifts, f32
        ],
        out_specs=edge_spec(d_out),
        compiler_params=pltpu.CompilerParams(
            dimension_semantics=("parallel",),
            vmem_limit_bytes=32 * 1024 * 1024,
        ),
    )(x_cat, batch2d, uw_b, w1_cat_b, w2_b, bias)

    return out


def make_params(key, in_features, out_features):
    """Deterministic synthetic parameters matching the PyTorch module shapes (Linear bias=False)."""
    d_in = in_features[0] * 2 + in_features[1] + in_features[2]
    ks = jax.random.split(key, 8)
    # nn.Linear stores weight as [out, in]; we keep the transposed [in, out] layout for x @ W.
    w1 = jax.random.normal(ks[0], (d_in, out_features), jnp.float32) * 0.1
    w2 = jax.random.normal(ks[1], (out_features, out_features), jnp.float32) * 0.1
    return dict(
        w1=w1, w2=w2,
        bn1_w=jax.random.uniform(ks[2], (out_features,), jnp.float32, 0.5, 1.5),
        bn1_b=jax.random.normal(ks[3], (out_features,), jnp.float32) * 0.1,
        bn1_mean=jax.random.normal(ks[4], (out_features,), jnp.float32) * 0.1,
        bn1_var=jax.random.uniform(ks[5], (out_features,), jnp.float32, 0.5, 1.5),
        bn2_w=jax.random.uniform(ks[6], (out_features,), jnp.float32, 0.5, 1.5),
        bn2_b=jax.random.normal(ks[7], (out_features,), jnp.float32) * 0.1,
        bn2_mean=jnp.zeros((out_features,), jnp.float32),
        bn2_var=jnp.ones((out_features,), jnp.float32),
    )


if __name__ == "__main__":
    # in_features = (node_feat, edge_feat, global_feat)
    in_features = (4, 4, 4)
    out_features = 32
    E, B = 1024, 2  # edges, graphs (two grid steps after the >=2-step tile cap)

    key = jax.random.PRNGKey(0)
    k_src, k_dst, k_ea, k_u, k_p = jax.random.split(key, 5)

    src       = jax.random.normal(k_src, (E, in_features[0]), jnp.float32)
    dest      = jax.random.normal(k_dst, (E, in_features[0]), jnp.float32)
    edge_attr = jax.random.normal(k_ea,  (E, in_features[1]), jnp.float32)
    u         = jax.random.normal(k_u,   (B, in_features[2]), jnp.float32)
    batch     = jnp.array([i % B for i in range(E)], dtype=jnp.int32)

    params = make_params(k_p, in_features, out_features)

    out = edge_model_forward(src, dest, edge_attr, u, batch, params)
    jax.block_until_ready(out)

    # pure-JAX f32 reference (kernel matmuls use bf16 operands -> loosened tolerance).
    x = jnp.concatenate([src, dest, edge_attr, u[batch]], axis=1)
    eps = 1e-5
    h = x @ params["w1"]
    h = (h - params["bn1_mean"]) / jnp.sqrt(params["bn1_var"] + eps) * params["bn1_w"] + params["bn1_b"]
    h = jnp.maximum(h, 0.0)
    ref = h @ params["w2"]
    ref = (ref - params["bn2_mean"]) / jnp.sqrt(params["bn2_var"] + eps) * params["bn2_w"] + params["bn2_b"]

    assert out.shape == ref.shape, (out.shape, ref.shape)
    assert jnp.allclose(out, ref, atol=5e-2, rtol=5e-2), (
        "mismatch vs reference, max abs err = %e" % float(jnp.max(jnp.abs(out - ref))))

    print("KERNEL_OK")
</pallas_src>

<mosaic_0001>
module attributes {stable_mosaic.version = 11 : i64} {
  func.func @_edge_mlp_kernel(%arg0: i32, %arg1: memref<512x12xbf16, #tpu.memory_space<vmem>>, %arg2: memref<512x1xi32, #tpu.memory_space<vmem>>, %arg3: memref<2x32xbf16, #tpu.memory_space<vmem>>, %arg4: memref<12x32xbf16, #tpu.memory_space<vmem>>, %arg5: memref<32x32xbf16, #tpu.memory_space<vmem>>, %arg6: memref<2x32xf32, #tpu.memory_space<vmem>>, %arg7: memref<512x32xf32, #tpu.memory_space<vmem>>) attributes {dimension_semantics = [#tpu.dimension_semantics<parallel>], iteration_bounds = array<i64: 2>, scalar_prefetch = 0 : i64, scratch_operands = 0 : i64, tpu.core_type = #tpu.core_type<tc>, window_params = [{transform_indices = @transform_0, window_bounds = array<i64: 512, 12>}, {transform_indices = @transform_1, window_bounds = array<i64: 512, 1>}, {pipeline_mode = #tpu.pipeline_mode<synchronous>, transform_indices = @transform_2, window_bounds = array<i64: 2, 32>}, {pipeline_mode = #tpu.pipeline_mode<synchronous>, transform_indices = @transform_3, window_bounds = array<i64: 12, 32>}, {pipeline_mode = #tpu.pipeline_mode<synchronous>, transform_indices = @transform_4, window_bounds = array<i64: 32, 32>}, {pipeline_mode = #tpu.pipeline_mode<synchronous>, transform_indices = @transform_5, window_bounds = array<i64: 2, 32>}, {transform_indices = @transform_6, window_bounds = array<i64: 512, 32>}]} {
    %c0 = arith.constant 0 : index
    %c0_0 = arith.constant 0 : index
    %0 = vector.load %arg1[%c0, %c0_0] : memref<512x12xbf16, #tpu.memory_space<vmem>>, vector<512x12xbf16>
    %c0_1 = arith.constant 0 : index
    %c0_2 = arith.constant 0 : index
    %1 = vector.load %arg4[%c0_1, %c0_2] : memref<12x32xbf16, #tpu.memory_space<vmem>>, vector<12x32xbf16>
    %cst = arith.constant dense<0.000000e+00> : vector<512x32xf32>
    %2 = tpu.matmul %0, %1, %cst {dimension_numbers = #tpu.dot_dimension_numbers<[1], [0], [0], [1], [0, 0, 1, 1], [], []>} : vector<512x12xbf16>, vector<12x32xbf16>, vector<512x32xf32> -> vector<512x32xf32>
    %c0_3 = arith.constant 0 : index
    %c0_4 = arith.constant 0 : index
    %3 = vector.load %arg2[%c0_3, %c0_4] : memref<512x1xi32, #tpu.memory_space<vmem>>, vector<512x1xi32>
    %4 = tpu.iota {dimensions = array<i32: 1>} : vector<512x2xi32>
    %5 = vector.broadcast %3 : vector<512x1xi32> to vector<512x2xi32>
    %6 = arith.cmpi eq, %5, %4 : vector<512x2xi32>
    %7 = arith.extui %6 : vector<512x2xi1> to vector<512x2xi32>
    %8 = arith.sitofp %7 : vector<512x2xi32> to vector<512x2xf32>
    %9 = arith.truncf %8 : vector<512x2xf32> to vector<512x2xbf16>
    %c0_5 = arith.constant 0 : index
    %c0_6 = arith.constant 0 : index
    %10 = vector.load %arg3[%c0_5, %c0_6] : memref<2x32xbf16, #tpu.memory_space<vmem>>, vector<2x32xbf16>
    %cst_7 = arith.constant dense<0.000000e+00> : vector<512x32xf32>
    %11 = tpu.matmul %9, %10, %cst_7 {dimension_numbers = #tpu.dot_dimension_numbers<[1], [0], [0], [1], [0, 0, 1, 1], [], []>} : vector<512x2xbf16>, vector<2x32xbf16>, vector<512x32xf32> -> vector<512x32xf32>
    %12 = arith.addf %2, %11 : vector<512x32xf32>
    %c0_8 = arith.constant 0 : index
    %c0_9 = arith.constant 0 : index
    %13 = vector.load %arg6[%c0_8, %c0_9] : memref<2x32xf32, #tpu.memory_space<vmem>>, vector<1x32xf32>
    %14 = vector.broadcast %13 : vector<1x32xf32> to vector<512x32xf32>
    %15 = arith.addf %12, %14 : vector<512x32xf32>
    %cst_10 = arith.constant 0.000000e+00 : f32
    %16 = vector.broadcast %cst_10 : f32 to vector<512x32xf32>
    %17 = arith.maximumf %15, %16 : vector<512x32xf32>
    %18 = arith.truncf %17 : vector<512x32xf32> to vector<512x32xbf16>
    %c0_11 = arith.constant 0 : index
    %c0_12 = arith.constant 0 : index
    %19 = vector.load %arg5[%c0_11, %c0_12] : memref<32x32xbf16, #tpu.memory_space<vmem>>, vector<32x32xbf16>
    %cst_13 = arith.constant dense<0.000000e+00> : vector<512x32xf32>
    %20 = tpu.matmul %18, %19, %cst_13 {dimension_numbers = #tpu.dot_dimension_numbers<[1], [0], [0], [1], [0, 0, 1, 1], [], []>} : vector<512x32xbf16>, vector<32x32xbf16>, vector<512x32xf32> -> vector<512x32xf32>
    %c1 = arith.constant 1 : index
    %c0_14 = arith.constant 0 : index
    %21 = vector.load %arg6[%c1, %c0_14] : memref<2x32xf32, #tpu.memory_space<vmem>>, vector<1x32xf32>
    %22 = vector.broadcast %21 : vector<1x32xf32> to vector<512x32xf32>
    %23 = arith.addf %20, %22 : vector<512x32xf32>
    %c0_15 = arith.constant 0 : index
    %c0_16 = arith.constant 0 : index
    %24 = vector.load %arg7[%c0_15, %c0_16] : memref<512x32xf32, #tpu.memory_space<vmem>>, vector<512x32xf32>
    tpu.vector_store %arg7[%c0_15, %c0_16], %23 {strides = array<i32>} : memref<512x32xf32, #tpu.memory_space<vmem>>, vector<512x32xf32>,
    return
  }
  func.func @transform_0(%arg0: i32) -> (i32, i32) {
    %c0_i32 = arith.constant 0 : i32
    %c0_i32_0 = arith.constant 0 : i32
    return %arg0, %c0_i32 : i32, i32
  }
  func.func @transform_1(%arg0: i32) -> (i32, i32) {
    %c0_i32 = arith.constant 0 : i32
    %c0_i32_0 = arith.constant 0 : i32
    return %arg0, %c0_i32 : i32, i32
  }
  func.func @transform_2(%arg0: i32) -> (i32, i32) {
    %c0_i32 = arith.constant 0 : i32
    %c0_i32_0 = arith.constant 0 : i32
    %c0_i32_1 = arith.constant 0 : i32
    return %c0_i32, %c0_i32_0 : i32, i32
  }
  func.func @transform_3(%arg0: i32) -> (i32, i32) {
    %c0_i32 = arith.constant 0 : i32
    %c0_i32_0 = arith.constant 0 : i32
    %c0_i32_1 = arith.constant 0 : i32
    return %c0_i32, %c0_i32_0 : i32, i32
  }
  func.func @transform_4(%arg0: i32) -> (i32, i32) {
    %c0_i32 = arith.constant 0 : i32
    %c0_i32_0 = arith.constant 0 : i32
    %c0_i32_1 = arith.constant 0 : i32
    return %c0_i32, %c0_i32_0 : i32, i32
  }
  func.func @transform_5(%arg0: i32) -> (i32, i32) {
    %c0_i32 = arith.constant 0 : i32
    %c0_i32_0 = arith.constant 0 : i32
    %c0_i32_1 = arith.constant 0 : i32
    return %c0_i32, %c0_i32_0 : i32, i32
  }
  func.func @transform_6(%arg0: i32) -> (i32, i32) {
    %c0_i32 = arith.constant 0 : i32
    %c0_i32_0 = arith.constant 0 : i32
    return %arg0, %c0_i32 : i32, i32
  }
}

</mosaic_0001>

<llo_original>
// kernel: tpu_custom_call.1
$region0: #{tpu_custom_call.1}
  #allocation0 [shape = 'u32[]', space=smem, size = 0x4, offset = 0x4, fixed_abs, tag = 'smem constant byte address 0x4 - core index']
  #allocation1 [shape = 'u32[144,128]{1,0:T(1,128)}', space=vmem, size = 0x12000, scoped, tag = 'internal scratch']
  %s0 = inlined_call_operand.vmem [shape: bf16[1024,12], index: 0, kind: input, shape index: {}]
  %s1 = inlined_call_operand.vmem [shape: s32[1024,1], index: 1, kind: input, shape index: {}]
  %s2 = inlined_call_operand.vmem [shape: bf16[2,32], index: 2, kind: input, shape index: {}]
  %s3 = inlined_call_operand.vmem [shape: bf16[12,32], index: 3, kind: input, shape index: {}]
  %s4 = inlined_call_operand.vmem [shape: bf16[32,32], index: 4, kind: input, shape index: {}]
  %s5 = inlined_call_operand.vmem [shape: f32[2,32], index: 5, kind: input, shape index: {}]
  %s6 = inlined_call_operand.vmem [shape: f32[1024,32], index: 6, kind: output, shape index: {}]
  %s7 = sld [smem:[#allocation0]]
  $region57: #{tpu_custom_call.1} parent=0
    _
  %s9 = ssub.s32 1, %s7
  %s10 = scalar_select 0, %s9, %s7
  loop: start=0, step=1, limit=4
  $region2: #{tpu_custom_call.1} parent=0 // loop_pre_header
    _
  $region3: #{tpu_custom_call.1} parent=0 // loop_header
    %s12 = sphi 0, %s16
    %p13 = scmp.ge.s32.totalorder %s12, 4
    %s22 = sphi 0, %s24
    %s25 = sphi 0, %s22
    %s26 = sphi 0, %s25
    %s42 = sphi 0, %s26
    %s48 = sphi 0, %s50
    %s51 = sphi 0, %s48
    %s52 = sphi 0, %s51
    %s68 = sphi 0, %s52
    %s72 = sphi 0, %s72
    %s74 = sphi 0, %s72
    %s75 = sphi 0, %s74
    %s89 = sphi 0, %s75
    %s93 = sphi 0, %s93
    %s95 = sphi 0, %s93
    %s96 = sphi 0, %s95
    %s110 = sphi 0, %s96
    %s114 = sphi 0, %s114
    %s116 = sphi 0, %s114
    %s117 = sphi 0, %s116
    %s131 = sphi 0, %s117
    %s135 = sphi 0, %s135
    %s137 = sphi 0, %s135
    %s138 = sphi 0, %s137
    %s152 = sphi 0, %s138
    %s158 = sphi 0, %s160
    %s161 = sphi 0, %s158
    %s162 = sphi 0, %s161
    %s178 = sphi 0, %s162
  $region4: #{tpu_custom_call.1} parent=0 // loop_header_branch
    %15 = sbr.rel (%p13) target = $region8
  $region5: #{tpu_custom_call.1} parent=0 // loop_body
    %s17 = ssub.s32 %s12, 1
    %s18 = ssub.s32 %s12, 2
    %s19 = sadd.s32 %s12, 1
    %s20 = ssub.s32 %s12, %s19
    %p21 = scmp.eq.s32.totalorder %s20, 0
    %s23 = sadd.s32 %s22, 1
    %s24 = scalar_select %p21, %s22, %s23
    %p27 = pneg %p21
    %p28 = scmp.eq.s32.totalorder %s12, 1
    %p29 = por %p27, %p28
    %p30 = scmp.ne.s32.totalorder %s22, %s25
    %p31 = scmp.eq.s32.totalorder %s12, 0
    %p32 = por %p30, %p31
    %p33 = scmp.ne.s32.totalorder %s22, %s25
    %p34 = scmp.eq.s32.totalorder %s17, 1
    %p35 = por %p33, %p34
    %p36 = scmp.ne.s32.totalorder %s25, %s26
    %p37 = scmp.eq.s32.totalorder %s17, 0
    %p38 = por %p36, %p37
    %p39 = scmp.ne.s32.totalorder %s25, %s26
    %p40 = scmp.eq.s32.totalorder %s18, 1
    %p41 = por %p39, %p40
    %p43 = scmp.ne.s32.totalorder %s26, %s42
    %p44 = scmp.eq.s32.totalorder %s18, 0
    %p45 = por %p43, %p44
    %s46 = ssub.s32 %s12, %s19
    %p47 = scmp.eq.s32.totalorder %s46, 0
    %s49 = sadd.s32 %s48, 1
    %s50 = scalar_select %p47, %s48, %s49
    %p53 = pneg %p47
    %p54 = scmp.eq.s32.totalorder %s12, 1
    %p55 = por %p53, %p54
    %p56 = scmp.ne.s32.totalorder %s48, %s51
    %p57 = scmp.eq.s32.totalorder %s12, 0
    %p58 = por %p56, %p57
    %p59 = scmp.ne.s32.totalorder %s48, %s51
    %p60 = scmp.eq.s32.totalorder %s17, 1
    %p61 = por %p59, %p60
    %p62 = scmp.ne.s32.totalorder %s51, %s52
    %p63 = scmp.eq.s32.totalorder %s17, 0
    %p64 = por %p62, %p63
    %p65 = scmp.ne.s32.totalorder %s51, %s52
    %p66 = scmp.eq.s32.totalorder %s18, 1
    %p67 = por %p65, %p66
    %p69 = scmp.ne.s32.totalorder %s52, %s68
    %p70 = scmp.eq.s32.totalorder %s18, 0
    %p71 = por %p69, %p70
    %s73 = sadd.s32 %s72, 1
    %p76 = scmp.eq.s32.totalorder %s12, 1
    %p77 = scmp.ne.s32.totalorder %s72, %s74
    %p78 = scmp.eq.s32.totalorder %s12, 0
    %p79 = por %p77, %p78
    %p80 = scmp.ne.s32.totalorder %s72, %s74
    %p81 = scmp.eq.s32.totalorder %s17, 1
    %p82 = por %p80, %p81
    %p83 = scmp.ne.s32.totalorder %s74, %s75
    %p84 = scmp.eq.s32.totalorder %s17, 0
    %p85 = por %p83, %p84
    %p86 = scmp.ne.s32.totalorder %s74, %s75
    %p87 = scmp.eq.s32.totalorder %s18, 1
    %p88 = por %p86, %p87
    %p90 = scmp.ne.s32.totalorder %s75, %s89
    %p91 = scmp.eq.s32.totalorder %s18, 0
    %p92 = por %p90, %p91
    %s94 = sadd.s32 %s93, 1
    %p97 = scmp.eq.s32.totalorder %s12, 1
    %p98 = scmp.ne.s32.totalorder %s93, %s95
    %p99 = scmp.eq.s32.totalorder %s12, 0
    %p100 = por %p98, %p99
    %p101 = scmp.ne.s32.totalorder %s93, %s95
    %p102 = scmp.eq.s32.totalorder %s17, 1
    %p103 = por %p101, %p102
    %p104 = scmp.ne.s32.totalorder %s95, %s96
    %p105 = scmp.eq.s32.totalorder %s17, 0
    %p106 = por %p104, %p105
    %p107 = scmp.ne.s32.totalorder %s95, %s96
    %p108 = scmp.eq.s32.totalorder %s18, 1
    %p109 = por %p107, %p108
    %p111 = scmp.ne.s32.totalorder %s96, %s110
    %p112 = scmp.eq.s32.totalorder %s18, 0
    %p113 = por %p111, %p112
    %s115 = sadd.s32 %s114, 1
    %p118 = scmp.eq.s32.totalorder %s12, 1
    %p119 = scmp.ne.s32.totalorder %s114, %s116
    %p120 = scmp.eq.s32.totalorder %s12, 0
    %p121 = por %p119, %p120
    %p122 = scmp.ne.s32.totalorder %s114, %s116
    %p123 = scmp.eq.s32.totalorder %s17, 1
    %p124 = por %p122, %p123
    %p125 = scmp.ne.s32.totalorder %s116, %s117
    %p126 = scmp.eq.s32.totalorder %s17, 0
    %p127 = por %p125, %p126
    %p128 = scmp.ne.s32.totalorder %s116, %s117
    %p129 = scmp.eq.s32.totalorder %s18, 1
    %p130 = por %p128, %p129
    %p132 = scmp.ne.s32.totalorder %s117, %s131
    %p133 = scmp.eq.s32.totalorder %s18, 0
    %p134 = por %p132, %p133
    %s136 = sadd.s32 %s135, 1
    %p139 = scmp.eq.s32.totalorder %s12, 1
    %p140 = scmp.ne.s32.totalorder %s135, %s137
    %p141 = scmp.eq.s32.totalorder %s12, 0
    %p142 = por %p140, %p141
    %p143 = scmp.ne.s32.totalorder %s135, %s137
    %p144 = scmp.eq.s32.totalorder %s17, 1
    %p145 = por %p143, %p144
    %p146 = scmp.ne.s32.totalorder %s137, %s138
    %p147 = scmp.eq.s32.totalorder %s17, 0
    %p148 = por %p146, %p147
    %p149 = scmp.ne.s32.totalorder %s137, %s138
    %p150 = scmp.eq.s32.totalorder %s18, 1
    %p151 = por %p149, %p150
    %p153 = scmp.ne.s32.totalorder %s138, %s152
    %p154 = scmp.eq.s32.totalorder %s18, 0
    %p155 = por %p153, %p154
    %s156 = ssub.s32 %s12, %s19
    %p157 = scmp.eq.s32.totalorder %s156, 0
    %s159 = sadd.s32 %s158, 1
    %s160 = scalar_select %p157, %s158, %s159
    %p163 = pneg %p157
    %p164 = scmp.eq.s32.totalorder %s12, 1
    %p165 = por %p163, %p164
    %p166 = scmp.ne.s32.totalorder %s158, %s161
    %p167 = scmp.eq.s32.totalorder %s12, 0
    %p168 = por %p166, %p167
    %p169 = scmp.ne.s32.totalorder %s158, %s161
    %p170 = scmp.eq.s32.totalorder %s17, 1
    %p171 = por %p169, %p170
    %p172 = scmp.ne.s32.totalorder %s161, %s162
    %p173 = scmp.eq.s32.totalorder %s17, 0
    %p174 = por %p172, %p173
    %p175 = scmp.ne.s32.totalorder %s161, %s162
    %p176 = scmp.eq.s32.totalorder %s18, 1
    %p177 = por %p175, %p176
    %p179 = scmp.ne.s32.totalorder %s162, %s178
    %p180 = scmp.eq.s32.totalorder %s18, 0
    %p181 = por %p179, %p180
    %p182 = scmp.le.s32.totalorder 1, %s12
    %p183 = scmp.lt.s32.totalorder %s12, 3
    %p184 = pnand %p182, %p183
    %p185 = pneg %p184
    // Predicated region
    $region9: #{tpu_custom_call.1} parent=5 // pred_check
      _
    $region10: #{tpu_custom_call.1} parent=5 // pred_check_branch
      %187 = sbr.rel (%p184) target = $region12
    $region11: #{tpu_custom_call.1} parent=5 // pred_region
      %s188 = ssub.s32 %s12, 1
      // Predicated region
      $region13: #{tpu_custom_call.1} parent=11 // pred_check
        %p189 = pneg %p85
      $region14: #{tpu_custom_call.1} parent=11 // pred_check_branch
        %191 = sbr.rel (%p189) target = $region16
      $region15: #{tpu_custom_call.1} parent=11 // pred_region
        _
      $region16: #{tpu_custom_call.1} parent=11 // pred_fallthru
        _
      // Predicated region
      $region17: #{tpu_custom_call.1} parent=11 // pred_check
        %p192 = pneg %p106
      $region18: #{tpu_custom_call.1} parent=11 // pred_check_branch
        %194 = sbr.rel (%p192) target = $region20
      $region19: #{tpu_custom_call.1} parent=11 // pred_region
        _
      $region20: #{tpu_custom_call.1} parent=11 // pred_fallthru
        _
      // Predicated region
      $region21: #{tpu_custom_call.1} parent=11 // pred_check
        %p195 = pneg %p127
      $region22: #{tpu_custom_call.1} parent=11 // pred_check_branch
        %197 = sbr.rel (%p195) target = $region24
      $region23: #{tpu_custom_call.1} parent=11 // pred_region
        _
      $region24: #{tpu_custom_call.1} parent=11 // pred_fallthru
        _
      // Predicated region
      $region25: #{tpu_custom_call.1} parent=11 // pred_check
        %p198 = pneg %p148
      $region26: #{tpu_custom_call.1} parent=11 // pred_check_branch
        %200 = sbr.rel (%p198) target = $region28
      $region27: #{tpu_custom_call.1} parent=11 // pred_region
        _
      $region28: #{tpu_custom_call.1} parent=11 // pred_fallthru
        _
    $region12: #{tpu_custom_call.1} parent=5 // pred_fallthru
      _
    %p201 = scmp.lt.s32.totalorder %s12, 2
    // Predicated region
    $region29: #{tpu_custom_call.1} parent=5 // pred_check
      %p202 = pneg %p201
    $region30: #{tpu_custom_call.1} parent=5 // pred_check_branch
      %204 = sbr.rel (%p202) target = $region32
    $region31: #{tpu_custom_call.1} parent=5 // pred_region
      // Predicated region
      $region33: #{tpu_custom_call.1} parent=31 // pred_check
        %p205 = pneg %p32
      $region34: #{tpu_custom_call.1} parent=31 // pred_check_branch
        %207 = sbr.rel (%p205) target = $region36
      $region35: #{tpu_custom_call.1} parent=31 // pred_region
        %s208 = smul.u32 64, %s12
        %p209 = scmp.lt.s32.totalorder %s208, 127
        %s210 = scalar_select %p209, %s208, 127
        %s211 = smul.addr %s210, 4
        %s212 = scalar_lea.vmem %s0, %s211
        %s213 = smul.u32 64, %s12
      $region36: #{tpu_custom_call.1} parent=31 // pred_fallthru
        _
      // Predicated region
      $region37: #{tpu_custom_call.1} parent=31 // pred_check
        %p214 = pneg %p58
      $region38: #{tpu_custom_call.1} parent=31 // pred_check_branch
        %216 = sbr.rel (%p214) target = $region40
      $region39: #{tpu_custom_call.1} parent=31 // pred_region
        %s217 = smul.u32 64, %s12
        %p218 = scmp.lt.s32.totalorder %s217, 127
        %s219 = scalar_select %p218, %s217, 127
        %s220 = smul.addr %s219, 8
        %s221 = scalar_lea.vmem %s1, %s220
        %s222 = smul.u32 64, %s12
      $region40: #{tpu_custom_call.1} parent=31 // pred_fallthru
        _
    $region32: #{tpu_custom_call.1} parent=5 // pred_fallthru
      _
    %p223 = scmp.le.s32.totalorder 1, %s12
    %p224 = scmp.lt.s32.totalorder %s12, 3
    %p225 = pnand %p223, %p224
    %p226 = pneg %p225
    // Predicated region
    $region41: #{tpu_custom_call.1} parent=5 // pred_check
      _
    $region42: #{tpu_custom_call.1} parent=5 // pred_check_branch
      %228 = sbr.rel (%p225) target = $region44
    $region43: #{tpu_custom_call.1} parent=5 // pred_region
      %s229 = ssub.s32 %s12, 1
      %s230 = smul.u32 64, %s17
      %p231 = scmp.lt.s32.totalorder %s230, 127
      %s232 = scalar_select %p231, %s230, 127
      %s233 = smul.addr %s232, 4
      %s234 = scalar_lea.vmem %s0, %s233
      %p235 = pneg %p38
      %p236 = pneg %p35
      %s237 = smul.u32 64, %s17
      %p238 = scmp.lt.s32.totalorder %s237, 127
      %s239 = scalar_select %p238, %s237, 127
      %s240 = smul.addr %s239, 8
      %s241 = scalar_lea.vmem %s1, %s240
      %p242 = pneg %p64
      %p243 = pneg %p61
      %p244 = pneg %p85
      %p245 = pneg %p82
      %p246 = pneg %p106
      %p247 = pneg %p103
      %p248 = pneg %p127
      %p249 = pneg %p124
      %p250 = pneg %p148
      %p251 = pneg %p145
      %p252 = pneg %p174
      %p253 = pneg %p171
      %s254 = smul.u32 64, %s17
      %p255 = scmp.lt.s32.totalorder %s254, 127
      %s256 = scalar_select %p255, %s254, 127
      %s257 = smul.addr %s256, 8
      %s258 = scalar_lea.vmem %s6, %s257
      %s259 = smul.u32 64, %s17
      %p260 = scmp.lt.s32.totalorder %s259, 127
      %s261 = scalar_select %p260, %s259, 127
      %s262 = smul.addr %s261, 4
      %s263 = scalar_lea.vmem %s0, %s262
      %s264 = smul.u32 64, %s17
      %s265 = smul.u32 64, %s17
      %p266 = scmp.lt.s32.totalorder %s265, 127
      %s267 = scalar_select %p266, %s265, 127
      %s268 = smul.addr %s267, 8
      %s269 = scalar_lea.vmem %s1, %s268
      %s270 = smul.u32 64, %s17
      %s271 = smul.u32 64, %s17
      %p272 = scmp.lt.s32.totalorder %s271, 127
      %s273 = scalar_select %p272, %s271, 127
      %s274 = smul.addr %s273, 8
      %s275 = scalar_lea.vmem %s6, %s274
      %s276 = smul.u32 64, %s17
      %v278 = vld [vmem:[%s263] sm:$0xf]
      %v279 = vld [vmem:[%s263 + $0x4] sm:$0xf]
      %v280 = vld [vmem:[%s263 + $0x8] sm:$0xf]
      %v281 = vld [vmem:[%s263 + $0xc] sm:$0xf]
      %v282 = vld [vmem:[%s263 + $0x10] sm:$0xf]
      %v283 = vld [vmem:[%s263 + $0x14] sm:$0xf]
      %v284 = vld [vmem:[%s263 + $0x18] sm:$0xf]
      %v285 = vld [vmem:[%s263 + $0x1c] sm:$0xf]
      %v286 = vld [vmem:[%s263 + $0x20] sm:$0xf]
      %v287 = vld [vmem:[%s263 + $0x24] sm:$0xf]
      %v288 = vld [vmem:[%s263 + $0x28] sm:$0xf]
      %v289 = vld [vmem:[%s263 + $0x2c] sm:$0xf]
      %v290 = vld [vmem:[%s263 + $0x30] sm:$0xf]
      %v291 = vld [vmem:[%s263 + $0x34] sm:$0xf]
      %v292 = vld [vmem:[%s263 + $0x38] sm:$0xf]
      %v293 = vld [vmem:[%s263 + $0x3c] sm:$0xf]
      %v294 = vld [vmem:[%s263 + $0x40] sm:$0xf]
      %v295 = vld [vmem:[%s263 + $0x44] sm:$0xf]
      %v296 = vld [vmem:[%s263 + $0x48] sm:$0xf]
      %v297 = vld [vmem:[%s263 + $0x4c] sm:$0xf]
      %v298 = vld [vmem:[%s263 + $0x50] sm:$0xf]
      %v299 = vld [vmem:[%s263 + $0x54] sm:$0xf]
      %v300 = vld [vmem:[%s263 + $0x58] sm:$0xf]
      %v301 = vld [vmem:[%s263 + $0x5c] sm:$0xf]
      %v302 = vld [vmem:[%s263 + $0x60] sm:$0xf]
      %v303 = vld [vmem:[%s263 + $0x64] sm:$0xf]
      %v304 = vld [vmem:[%s263 + $0x68] sm:$0xf]
      %v305 = vld [vmem:[%s263 + $0x6c] sm:$0xf]
      %v306 = vld [vmem:[%s263 + $0x70] sm:$0xf]
      %v307 = vld [vmem:[%s263 + $0x74] sm:$0xf]
      %v308 = vld [vmem:[%s263 + $0x78] sm:$0xf]
      %v309 = vld [vmem:[%s263 + $0x7c] sm:$0xf]
      %v310 = vld [vmem:[%s263 + $0x80] sm:$0xf]
      %v311 = vld [vmem:[%s263 + $0x84] sm:$0xf]
      %v312 = vld [vmem:[%s263 + $0x88] sm:$0xf]
      %v313 = vld [vmem:[%s263 + $0x8c] sm:$0xf]
      %v314 = vld [vmem:[%s263 + $0x90] sm:$0xf]
      %v315 = vld [vmem:[%s263 + $0x94] sm:$0xf]
      %v316 = vld [vmem:[%s263 + $0x98] sm:$0xf]
      %v317 = vld [vmem:[%s263 + $0x9c] sm:$0xf]
      %v318 = vld [vmem:[%s263 + $0xa0] sm:$0xf]
      %v319 = vld [vmem:[%s263 + $0xa4] sm:$0xf]
      %v320 = vld [vmem:[%s263 + $0xa8] sm:$0xf]
      %v321 = vld [vmem:[%s263 + $0xac] sm:$0xf]
      %v322 = vld [vmem:[%s263 + $0xb0] sm:$0xf]
      %v323 = vld [vmem:[%s263 + $0xb4] sm:$0xf]
      %v324 = vld [vmem:[%s263 + $0xb8] sm:$0xf]
      %v325 = vld [vmem:[%s263 + $0xbc] sm:$0xf]
      %v326 = vld [vmem:[%s263 + $0xc0] sm:$0xf]
      %v327 = vld [vmem:[%s263 + $0xc4] sm:$0xf]
      %v328 = vld [vmem:[%s263 + $0xc8] sm:$0xf]
      %v329 = vld [vmem:[%s263 + $0xcc] sm:$0xf]
      %v330 = vld [vmem:[%s263 + $0xd0] sm:$0xf]
      %v331 = vld [vmem:[%s263 + $0xd4] sm:$0xf]
      %v332 = vld [vmem:[%s263 + $0xd8] sm:$0xf]
      %v333 = vld [vmem:[%s263 + $0xdc] sm:$0xf]
      %v334 = vld [vmem:[%s263 + $0xe0] sm:$0xf]
      %v335 = vld [vmem:[%s263 + $0xe4] sm:$0xf]
      %v336 = vld [vmem:[%s263 + $0xe8] sm:$0xf]
      %v337 = vld [vmem:[%s263 + $0xec] sm:$0xf]
      %v338 = vld [vmem:[%s263 + $0xf0] sm:$0xf]
      %v339 = vld [vmem:[%s263 + $0xf4] sm:$0xf]
      %v340 = vld [vmem:[%s263 + $0xf8] sm:$0xf]
      %v341 = vld [vmem:[%s263 + $0xfc] sm:$0xf]
      %v342 = vld [vmem:[%s3] sm:$0xf]
      %v343 = vld [vmem:[%s3 + $0x4] sm:$0x3]
      %v344 = vld [vmem:[%s269] sm:$0xff]
      %v345 = vld [vmem:[%s269 + $0x8] sm:$0xff]
      %v346 = vld [vmem:[%s269 + $0x10] sm:$0xff]
      %v347 = vld [vmem:[%s269 + $0x18] sm:$0xff]
      %v348 = vld [vmem:[%s269 + $0x20] sm:$0xff]
      %v349 = vld [vmem:[%s269 + $0x28] sm:$0xff]
      %v350 = vld [vmem:[%s269 + $0x30] sm:$0xff]
      %v351 = vld [vmem:[%s269 + $0x38] sm:$0xff]
      %v352 = vld [vmem:[%s269 + $0x40] sm:$0xff]
      %v353 = vld [vmem:[%s269 + $0x48] sm:$0xff]
      %v354 = vld [vmem:[%s269 + $0x50] sm:$0xff]
      %v355 = vld [vmem:[%s269 + $0x58] sm:$0xff]
      %v356 = vld [vmem:[%s269 + $0x60] sm:$0xff]
      %v357 = vld [vmem:[%s269 + $0x68] sm:$0xff]
      %v358 = vld [vmem:[%s269 + $0x70] sm:$0xff]
      %v359 = vld [vmem:[%s269 + $0x78] sm:$0xff]
      %v360 = vld [vmem:[%s269 + $0x80] sm:$0xff]
      %v361 = vld [vmem:[%s269 + $0x88] sm:$0xff]
      %v362 = vld [vmem:[%s269 + $0x90] sm:$0xff]
      %v363 = vld [vmem:[%s269 + $0x98] sm:$0xff]
      %v364 = vld [vmem:[%s269 + $0xa0] sm:$0xff]
      %v365 = vld [vmem:[%s269 + $0xa8] sm:$0xff]
      %v366 = vld [vmem:[%s269 + $0xb0] sm:$0xff]
      %v367 = vld [vmem:[%s269 + $0xb8] sm:$0xff]
      %v368 = vld [vmem:[%s269 + $0xc0] sm:$0xff]
      %v369 = vld [vmem:[%s269 + $0xc8] sm:$0xff]
      %v370 = vld [vmem:[%s269 + $0xd0] sm:$0xff]
      %v371 = vld [vmem:[%s269 + $0xd8] sm:$0xff]
      %v372 = vld [vmem:[%s269 + $0xe0] sm:$0xff]
      %v373 = vld [vmem:[%s269 + $0xe8] sm:$0xff]
      %v374 = vld [vmem:[%s269 + $0xf0] sm:$0xff]
      %v375 = vld [vmem:[%s269 + $0xf8] sm:$0xff]
      %v376 = vld [vmem:[%s269 + $0x100] sm:$0xff]
      %v377 = vld [vmem:[%s269 + $0x108] sm:$0xff]
      %v378 = vld [vmem:[%s269 + $0x110] sm:$0xff]
      %v379 = vld [vmem:[%s269 + $0x118] sm:$0xff]
      %v380 = vld [vmem:[%s269 + $0x120] sm:$0xff]
      %v381 = vld [vmem:[%s269 + $0x128] sm:$0xff]
      %v382 = vld [vmem:[%s269 + $0x130] sm:$0xff]
      %v383 = vld [vmem:[%s269 + $0x138] sm:$0xff]
      %v384 = vld [vmem:[%s269 + $0x140] sm:$0xff]
      %v385 = vld [vmem:[%s269 + $0x148] sm:$0xff]
      %v386 = vld [vmem:[%s269 + $0x150] sm:$0xff]
      %v387 = vld [vmem:[%s269 + $0x158] sm:$0xff]
      %v388 = vld [vmem:[%s269 + $0x160] sm:$0xff]
      %v389 = vld [vmem:[%s269 + $0x168] sm:$0xff]
      %v390 = vld [vmem:[%s269 + $0x170] sm:$0xff]
      %v391 = vld [vmem:[%s269 + $0x178] sm:$0xff]
      %v392 = vld [vmem:[%s269 + $0x180] sm:$0xff]
      %v393 = vld [vmem:[%s269 + $0x188] sm:$0xff]
      %v394 = vld [vmem:[%s269 + $0x190] sm:$0xff]
      %v395 = vld [vmem:[%s269 + $0x198] sm:$0xff]
      %v396 = vld [vmem:[%s269 + $0x1a0] sm:$0xff]
      %v397 = vld [vmem:[%s269 + $0x1a8] sm:$0xff]
      %v398 = vld [vmem:[%s269 + $0x1b0] sm:$0xff]
      %v399 = vld [vmem:[%s269 + $0x1b8] sm:$0xff]
      %v400 = vld [vmem:[%s269 + $0x1c0] sm:$0xff]
      %v401 = vld [vmem:[%s269 + $0x1c8] sm:$0xff]
      %v402 = vld [vmem:[%s269 + $0x1d0] sm:$0xff]
      %v403 = vld [vmem:[%s269 + $0x1d8] sm:$0xff]
      %v404 = vld [vmem:[%s269 + $0x1e0] sm:$0xff]
      %v405 = vld [vmem:[%s269 + $0x1e8] sm:$0xff]
      %v406 = vld [vmem:[%s269 + $0x1f0] sm:$0xff]
      %v407 = vld [vmem:[%s269 + $0x1f8] sm:$0xff]
      %v408 = vlaneseq
      %v409 = vand.u32 %v408, 127
      %410 = vset.pattern.permute.xlu0 0
      %411 = vperm.xlu0 %410, %v344
      %v412 = vpop.permute.xlu0 %411
      %413 = vset.pattern.permute.xlu0 0
      %414 = vperm.xlu0 %413, %v345
      %v415 = vpop.permute.xlu0 %414
      %416 = vset.pattern.permute.xlu0 0
      %417 = vperm.xlu0 %416, %v346
      %v418 = vpop.permute.xlu0 %417
      %419 = vset.pattern.permute.xlu0 0
      %420 = vperm.xlu0 %419, %v347
      %v421 = vpop.permute.xlu0 %420
      %422 = vset.pattern.permute.xlu0 0
      %423 = vperm.xlu0 %422, %v348
      %v424 = vpop.permute.xlu0 %423
      %425 = vset.pattern.permute.xlu0 0
      %426 = vperm.xlu0 %425, %v349
      %v427 = vpop.permute.xlu0 %426
      %428 = vset.pattern.permute.xlu0 0
      %429 = vperm.xlu0 %428, %v350
      %v430 = vpop.permute.xlu0 %429
      %431 = vset.pattern.permute.xlu0 0
      %432 = vperm.xlu0 %431, %v351
      %v433 = vpop.permute.xlu0 %432
      %434 = vset.pattern.permute.xlu0 0
      %435 = vperm.xlu0 %434, %v352
      %v436 = vpop.permute.xlu0 %435
      %437 = vset.pattern.permute.xlu0 0
      %438 = vperm.xlu0 %437, %v353
      %v439 = vpop.permute.xlu0 %438
      %440 = vset.pattern.permute.xlu0 0
      %441 = vperm.xlu0 %440, %v354
      %v442 = vpop.permute.xlu0 %441
      %443 = vset.pattern.permute.xlu0 0
      %444 = vperm.xlu0 %443, %v355
      %v445 = vpop.permute.xlu0 %444
      %446 = vset.pattern.permute.xlu0 0
      %447 = vperm.xlu0 %446, %v356
      %v448 = vpop.permute.xlu0 %447
      %449 = vset.pattern.permute.xlu0 0
      %450 = vperm.xlu0 %449, %v357
      %v451 = vpop.permute.xlu0 %450
      %452 = vset.pattern.permute.xlu0 0
      %453 = vperm.xlu0 %452, %v358
      %v454 = vpop.permute.xlu0 %453
      %455 = vset.pattern.permute.xlu0 0
      %456 = vperm.xlu0 %455, %v359
      %v457 = vpop.permute.xlu0 %456
      %458 = vset.pattern.permute.xlu0 0
      %459 = vperm.xlu0 %458, %v360
      %v460 = vpop.permute.xlu0 %459
      %461 = vset.pattern.permute.xlu0 0
      %462 = vperm.xlu0 %461, %v361
      %v463 = vpop.permute.xlu0 %462
      %464 = vset.pattern.permute.xlu0 0
      %465 = vperm.xlu0 %464, %v362
      %v466 = vpop.permute.xlu0 %465
      %467 = vset.pattern.permute.xlu0 0
      %468 = vperm.xlu0 %467, %v363
      %v469 = vpop.permute.xlu0 %468
      %470 = vset.pattern.permute.xlu0 0
      %471 = vperm.xlu0 %470, %v364
      %v472 = vpop.permute.xlu0 %471
      %473 = vset.pattern.permute.xlu0 0
      %474 = vperm.xlu0 %473, %v365
      %v475 = vpop.permute.xlu0 %474
      %476 = vset.pattern.permute.xlu0 0
      %477 = vperm.xlu0 %476, %v366
      %v478 = vpop.permute.xlu0 %477
      %479 = vset.pattern.permute.xlu0 0
      %480 = vperm.xlu0 %479, %v367
      %v481 = vpop.permute.xlu0 %480
      %482 = vset.pattern.permute.xlu0 0
      %483 = vperm.xlu0 %482, %v368
      %v484 = vpop.permute.xlu0 %483
      %485 = vset.pattern.permute.xlu0 0
      %486 = vperm.xlu0 %485, %v369
      %v487 = vpop.permute.xlu0 %486
      %488 = vset.pattern.permute.xlu0 0
      %489 = vperm.xlu0 %488, %v370
      %v490 = vpop.permute.xlu0 %489
      %491 = vset.pattern.permute.xlu0 0
      %492 = vperm.xlu0 %491, %v371
      %v493 = vpop.permute.xlu0 %492
      %494 = vset.pattern.permute.xlu0 0
      %495 = vperm.xlu0 %494, %v372
      %v496 = vpop.permute.xlu0 %495
      %497 = vset.pattern.permute.xlu0 0
      %498 = vperm.xlu0 %497, %v373
      %v499 = vpop.permute.xlu0 %498
      %500 = vset.pattern.permute.xlu0 0
      %501 = vperm.xlu0 %500, %v374
      %v502 = vpop.permute.xlu0 %501
      %503 = vset.pattern.permute.xlu0 0
      %504 = vperm.xlu0 %503, %v375
      %v505 = vpop.permute.xlu0 %504
      %506 = vset.pattern.permute.xlu0 0
      %507 = vperm.xlu0 %506, %v376
      %v508 = vpop.permute.xlu0 %507
      %509 = vset.pattern.permute.xlu0 0
      %510 = vperm.xlu0 %509, %v377
      %v511 = vpop.permute.xlu0 %510
      %512 = vset.pattern.permute.xlu0 0
      %513 = vperm.xlu0 %512, %v378
      %v514 = vpop.permute.xlu0 %513
      %515 = vset.pattern.permute.xlu0 0
      %516 = vperm.xlu0 %515, %v379
      %v517 = vpop.permute.xlu0 %516
      %518 = vset.pattern.permute.xlu0 0
      %519 = vperm.xlu0 %518, %v380
      %v520 = vpop.permute.xlu0 %519
      %521 = vset.pattern.permute.xlu0 0
      %522 = vperm.xlu0 %521, %v381
      %v523 = vpop.permute.xlu0 %522
      %524 = vset.pattern.permute.xlu0 0
      %525 = vperm.xlu0 %524, %v382
      %v526 = vpop.permute.xlu0 %525
      %527 = vset.pattern.permute.xlu0 0
      %528 = vperm.xlu0 %527, %v383
      %v529 = vpop.permute.xlu0 %528
      %530 = vset.pattern.permute.xlu0 0
      %531 = vperm.xlu0 %530, %v384
      %v532 = vpop.permute.xlu0 %531
      %533 = vset.pattern.permute.xlu0 0
      %534 = vperm.xlu0 %533, %v385
      %v535 = vpop.permute.xlu0 %534
      %536 = vset.pattern.permute.xlu0 0
      %537 = vperm.xlu0 %536, %v386
      %v538 = vpop.permute.xlu0 %537
      %539 = vset.pattern.permute.xlu0 0
      %540 = vperm.xlu0 %539, %v387
      %v541 = vpop.permute.xlu0 %540
      %542 = vset.pattern.permute.xlu0 0
      %543 = vperm.xlu0 %542, %v388
      %v544 = vpop.permute.xlu0 %543
      %545 = vset.pattern.permute.xlu0 0
      %546 = vperm.xlu0 %545, %v389
      %v547 = vpop.permute.xlu0 %546
      %548 = vset.pattern.permute.xlu0 0
      %549 = vperm.xlu0 %548, %v390
      %v550 = vpop.permute.xlu0 %549
      %551 = vset.pattern.permute.xlu0 0
      %552 = vperm.xlu0 %551, %v391
      %v553 = vpop.permute.xlu0 %552
      %554 = vset.pattern.permute.xlu0 0
      %555 = vperm.xlu0 %554, %v392
      %v556 = vpop.permute.xlu0 %555
      %557 = vset.pattern.permute.xlu0 0
      %558 = vperm.xlu0 %557, %v393
      %v559 = vpop.permute.xlu0 %558
      %560 = vset.pattern.permute.xlu0 0
      %561 = vperm.xlu0 %560, %v394
      %v562 = vpop.permute.xlu0 %561
      %563 = vset.pattern.permute.xlu0 0
      %564 = vperm.xlu0 %563, %v395
      %v565 = vpop.permute.xlu0 %564
      %566 = vset.pattern.permute.xlu0 0
      %567 = vperm.xlu0 %566, %v396
      %v568 = vpop.permute.xlu0 %567
      %569 = vset.pattern.permute.xlu0 0
      %570 = vperm.xlu0 %569, %v397
      %v571 = vpop.permute.xlu0 %570
      %572 = vset.pattern.permute.xlu0 0
      %573 = vperm.xlu0 %572, %v398
      %v574 = vpop.permute.xlu0 %573
      %575 = vset.pattern.permute.xlu0 0
      %576 = vperm.xlu0 %575, %v399
      %v577 = vpop.permute.xlu0 %576
      %578 = vset.pattern.permute.xlu0 0
      %579 = vperm.xlu0 %578, %v400
      %v580 = vpop.permute.xlu0 %579
      %581 = vset.pattern.permute.xlu0 0
      %582 = vperm.xlu0 %581, %v401
      %v583 = vpop.permute.xlu0 %582
      %584 = vset.pattern.permute.xlu0 0
      %585 = vperm.xlu0 %584, %v402
      %v586 = vpop.permute.xlu0 %585
      %587 = vset.pattern.permute.xlu0 0
      %588 = vperm.xlu0 %587, %v403
      %v589 = vpop.permute.xlu0 %588
      %590 = vset.pattern.permute.xlu0 0
      %591 = vperm.xlu0 %590, %v404
      %v592 = vpop.permute.xlu0 %591
      %593 = vset.pattern.permute.xlu0 0
      %594 = vperm.xlu0 %593, %v405
      %v595 = vpop.permute.xlu0 %594
      %596 = vset.pattern.permute.xlu0 0
      %597 = vperm.xlu0 %596, %v406
      %v598 = vpop.permute.xlu0 %597
      %599 = vset.pattern.permute.xlu0 0
      %600 = vperm.xlu0 %599, %v407
      %v601 = vpop.permute.xlu0 %600
      %vm602 = vcmp.eq.s32.totalorder %v412, %v409
      %vm603 = vcmp.eq.s32.totalorder %v415, %v409
      %vm604 = vcmp.eq.s32.totalorder %v418, %v409
      %vm605 = vcmp.eq.s32.totalorder %v421, %v409
      %vm606 = vcmp.eq.s32.totalorder %v424, %v409
      %vm607 = vcmp.eq.s32.totalorder %v427, %v409
      %vm608 = vcmp.eq.s32.totalorder %v430, %v409
      %vm609 = vcmp.eq.s32.totalorder %v433, %v409
      %vm610 = vcmp.eq.s32.totalorder %v436, %v409
      %vm611 = vcmp.eq.s32.totalorder %v439, %v409
      %vm612 = vcmp.eq.s32.totalorder %v442, %v409
      %vm613 = vcmp.eq.s32.totalorder %v445, %v409
      %vm614 = vcmp.eq.s32.totalorder %v448, %v409
      %vm615 = vcmp.eq.s32.totalorder %v451, %v409
      %vm616 = vcmp.eq.s32.totalorder %v454, %v409
      %vm617 = vcmp.eq.s32.totalorder %v457, %v409
      %vm618 = vcmp.eq.s32.totalorder %v460, %v409
      %vm619 = vcmp.eq.s32.totalorder %v463, %v409
      %vm620 = vcmp.eq.s32.totalorder %v466, %v409
      %vm621 = vcmp.eq.s32.totalorder %v469, %v409
      %vm622 = vcmp.eq.s32.totalorder %v472, %v409
      %vm623 = vcmp.eq.s32.totalorder %v475, %v409
      %vm624 = vcmp.eq.s32.totalorder %v478, %v409
      %vm625 = vcmp.eq.s32.totalorder %v481, %v409
      %vm626 = vcmp.eq.s32.totalorder %v484, %v409
      %vm627 = vcmp.eq.s32.totalorder %v487, %v409
      %vm628 = vcmp.eq.s32.totalorder %v490, %v409
      %vm629 = vcmp.eq.s32.totalorder %v493, %v409
      %vm630 = vcmp.eq.s32.totalorder %v496, %v409
      %vm631 = vcmp.eq.s32.totalorder %v499, %v409
      %vm632 = vcmp.eq.s32.totalorder %v502, %v409
      %vm633 = vcmp.eq.s32.totalorder %v505, %v409
      %vm634 = vcmp.eq.s32.totalorder %v508, %v409
      %vm635 = vcmp.eq.s32.totalorder %v511, %v409
      %vm636 = vcmp.eq.s32.totalorder %v514, %v409
      %vm637 = vcmp.eq.s32.totalorder %v517, %v409
      %vm638 = vcmp.eq.s32.totalorder %v520, %v409
      %vm639 = vcmp.eq.s32.totalorder %v523, %v409
      %vm640 = vcmp.eq.s32.totalorder %v526, %v409
      %vm641 = vcmp.eq.s32.totalorder %v529, %v409
      %vm642 = vcmp.eq.s32.totalorder %v532, %v409
      %vm643 = vcmp.eq.s32.totalorder %v535, %v409
      %vm644 = vcmp.eq.s32.totalorder %v538, %v409
      %vm645 = vcmp.eq.s32.totalorder %v541, %v409
      %vm646 = vcmp.eq.s32.totalorder %v544, %v409
      %vm647 = vcmp.eq.s32.totalorder %v547, %v409
      %vm648 = vcmp.eq.s32.totalorder %v550, %v409
      %vm649 = vcmp.eq.s32.totalorder %v553, %v409
      %vm650 = vcmp.eq.s32.totalorder %v556, %v409
      %vm651 = vcmp.eq.s32.totalorder %v559, %v409
      %vm652 = vcmp.eq.s32.totalorder %v562, %v409
      %vm653 = vcmp.eq.s32.totalorder %v565, %v409
      %vm654 = vcmp.eq.s32.totalorder %v568, %v409
      %vm655 = vcmp.eq.s32.totalorder %v571, %v409
      %vm656 = vcmp.eq.s32.totalorder %v574, %v409
      %vm657 = vcmp.eq.s32.totalorder %v577, %v409
      %vm658 = vcmp.eq.s32.totalorder %v580, %v409
      %vm659 = vcmp.eq.s32.totalorder %v583, %v409
      %vm660 = vcmp.eq.s32.totalorder %v586, %v409
      %vm661 = vcmp.eq.s32.totalorder %v589, %v409
      %vm662 = vcmp.eq.s32.totalorder %v592, %v409
      %vm663 = vcmp.eq.s32.totalorder %v595, %v409
      %vm664 = vcmp.eq.s32.totalorder %v598, %v409
      %vm665 = vcmp.eq.s32.totalorder %v601, %v409
      %v666 = vsel %vm602, 1, 0
      %v667 = vsel %vm603, 1, 0
      %v668 = vsel %vm604, 1, 0
      %v669 = vsel %vm605, 1, 0
      %v670 = vsel %vm606, 1, 0
      %v671 = vsel %vm607, 1, 0
      %v672 = vsel %vm608, 1, 0
      %v673 = vsel %vm609, 1, 0
      %v674 = vsel %vm610, 1, 0
      %v675 = vsel %vm611, 1, 0
      %v676 = vsel %vm612, 1, 0
      %v677 = vsel %vm613, 1, 0
      %v678 = vsel %vm614, 1, 0
      %v679 = vsel %vm615, 1, 0
      %v680 = vsel %vm616, 1, 0
      %v681 = vsel %vm617, 1, 0
      %v682 = vsel %vm618, 1, 0
      %v683 = vsel %vm619, 1, 0
      %v684 = vsel %vm620, 1, 0
      %v685 = vsel %vm621, 1, 0
      %v686 = vsel %vm622, 1, 0
      %v687 = vsel %vm623, 1, 0
      %v688 = vsel %vm624, 1, 0
      %v689 = vsel %vm625, 1, 0
      %v690 = vsel %vm626, 1, 0
      %v691 = vsel %vm627, 1, 0
      %v692 = vsel %vm628, 1, 0
      %v693 = vsel %vm629, 1, 0
      %v694 = vsel %vm630, 1, 0
      %v695 = vsel %vm631, 1, 0
      %v696 = vsel %vm632, 1, 0
      %v697 = vsel %vm633, 1, 0
      %v698 = vsel %vm634, 1, 0
      %v699 = vsel %vm635, 1, 0
      %v700 = vsel %vm636, 1, 0
      %v701 = vsel %vm637, 1, 0
      %v702 = vsel %vm638, 1, 0
      %v703 = vsel %vm639, 1, 0
      %v704 = vsel %vm640, 1, 0
      %v705 = vsel %vm641, 1, 0
      %v706 = vsel %vm642, 1, 0
      %v707 = vsel %vm643, 1, 0
      %v708 = vsel %vm644, 1, 0
      %v709 = vsel %vm645, 1, 0
      %v710 = vsel %vm646, 1, 0
      %v711 = vsel %vm647, 1, 0
      %v712 = vsel %vm648, 1, 0
      %v713 = vsel %vm649, 1, 0
      %v714 = vsel %vm650, 1, 0
      %v715 = vsel %vm651, 1, 0
      %v716 = vsel %vm652, 1, 0
      %v717 = vsel %vm653, 1, 0
      %v718 = vsel %vm654, 1, 0
      %v719 = vsel %vm655, 1, 0
      %v720 = vsel %vm656, 1, 0
      %v721 = vsel %vm657, 1, 0
      %v722 = vsel %vm658, 1, 0
      %v723 = vsel %vm659, 1, 0
      %v724 = vsel %vm660, 1, 0
      %v725 = vsel %vm661, 1, 0
      %v726 = vsel %vm662, 1, 0
      %v727 = vsel %vm663, 1, 0
      %v728 = vsel %vm664, 1, 0
      %v729 = vsel %vm665, 1, 0
      %v730 = vcvt.s32.f32 %v666
      %v731 = vcvt.s32.f32 %v667
      %v732 = vcvt.s32.f32 %v668
      %v733 = vcvt.s32.f32 %v669
      %v734 = vcvt.s32.f32 %v670
      %v735 = vcvt.s32.f32 %v671
      %v736 = vcvt.s32.f32 %v672
      %v737 = vcvt.s32.f32 %v673
      %v738 = vcvt.s32.f32 %v674
      %v739 = vcvt.s32.f32 %v675
      %v740 = vcvt.s32.f32 %v676
      %v741 = vcvt.s32.f32 %v677
      %v742 = vcvt.s32.f32 %v678
      %v743 = vcvt.s32.f32 %v679
      %v744 = vcvt.s32.f32 %v680
      %v745 = vcvt.s32.f32 %v681
      %v746 = vcvt.s32.f32 %v682
      %v747 = vcvt.s32.f32 %v683
      %v748 = vcvt.s32.f32 %v684
      %v749 = vcvt.s32.f32 %v685
      %v750 = vcvt.s32.f32 %v686
      %v751 = vcvt.s32.f32 %v687
      %v752 = vcvt.s32.f32 %v688
      %v753 = vcvt.s32.f32 %v689
      %v754 = vcvt.s32.f32 %v690
      %v755 = vcvt.s32.f32 %v691
      %v756 = vcvt.s32.f32 %v692
      %v757 = vcvt.s32.f32 %v693
      %v758 = vcvt.s32.f32 %v694
      %v759 = vcvt.s32.f32 %v695
      %v760 = vcvt.s32.f32 %v696
      %v761 = vcvt.s32.f32 %v697
      %v762 = vcvt.s32.f32 %v698
      %v763 = vcvt.s32.f32 %v699
      %v764 = vcvt.s32.f32 %v700
      %v765 = vcvt.s32.f32 %v701
      %v766 = vcvt.s32.f32 %v702
      %v767 = vcvt.s32.f32 %v703
      %v768 = vcvt.s32.f32 %v704
      %v769 = vcvt.s32.f32 %v705
      %v770 = vcvt.s32.f32 %v706
      %v771 = vcvt.s32.f32 %v707
      %v772 = vcvt.s32.f32 %v708
      %v773 = vcvt.s32.f32 %v709
      %v774 = vcvt.s32.f32 %v710
      %v775 = vcvt.s32.f32 %v711
      %v776 = vcvt.s32.f32 %v712
      %v777 = vcvt.s32.f32 %v713
      %v778 = vcvt.s32.f32 %v714
      %v779 = vcvt.s32.f32 %v715
      %v780 = vcvt.s32.f32 %v716
      %v781 = vcvt.s32.f32 %v717
      %v782 = vcvt.s32.f32 %v718
      %v783 = vcvt.s32.f32 %v719
      %v784 = vcvt.s32.f32 %v720
      %v785 = vcvt.s32.f32 %v721
      %v786 = vcvt.s32.f32 %v722
      %v787 = vcvt.s32.f32 %v723
      %v788 = vcvt.s32.f32 %v724
      %v789 = vcvt.s32.f32 %v725
      %v790 = vcvt.s32.f32 %v726
      %v791 = vcvt.s32.f32 %v727
      %v792 = vcvt.s32.f32 %v728
      %v793 = vcvt.s32.f32 %v729
      %v794 = vpack.c.bf16 %v731, %v730
      %v795 = vpack.c.bf16 %v733, %v732
      %v796 = vpack.c.bf16 %v735, %v734
      %v797 = vpack.c.bf16 %v737, %v736
      %v798 = vpack.c.bf16 %v739, %v738
      %v799 = vpack.c.bf16 %v741, %v740
      %v800 = vpack.c.bf16 %v743, %v742
      %v801 = vpack.c.bf16 %v745, %v744
      %v802 = vpack.c.bf16 %v747, %v746
      %v803 = vpack.c.bf16 %v749, %v748
      %v804 = vpack.c.bf16 %v751, %v750
      %v805 = vpack.c.bf16 %v753, %v752
      %v806 = vpack.c.bf16 %v755, %v754
      %v807 = vpack.c.bf16 %v757, %v756
      %v808 = vpack.c.bf16 %v759, %v758
      %v809 = vpack.c.bf16 %v761, %v760
      %v810 = vpack.c.bf16 %v763, %v762
      %v811 = vpack.c.bf16 %v765, %v764
      %v812 = vpack.c.bf16 %v767, %v766
      %v813 = vpack.c.bf16 %v769, %v768
      %v814 = vpack.c.bf16 %v771, %v770
      %v815 = vpack.c.bf16 %v773, %v772
      %v816 = vpack.c.bf16 %v775, %v774
      %v817 = vpack.c.bf16 %v777, %v776
      %v818 = vpack.c.bf16 %v779, %v778
      %v819 = vpack.c.bf16 %v781, %v780
      %v820 = vpack.c.bf16 %v783, %v782
      %v821 = vpack.c.bf16 %v785, %v784
      %v822 = vpack.c.bf16 %v787, %v786
      %v823 = vpack.c.bf16 %v789, %v788
      %v824 = vpack.c.bf16 %v791, %v790
      %v825 = vpack.c.bf16 %v793, %v792
      %v826 = vld [vmem:[%s2] sm:$0x1]
      %vm827 = vcmask 15360
      %v829 = vsel %vm827, %v794, 0
      %v832 = vsel %vm827, %v795, 0
      %v835 = vsel %vm827, %v796, 0
      %v838 = vsel %vm827, %v797, 0
      %v841 = vsel %vm827, %v798, 0
      %v844 = vsel %vm827, %v799, 0
      %v847 = vsel %vm827, %v800, 0
      %v850 = vsel %vm827, %v801, 0
      %v853 = vsel %vm827, %v802, 0
      %v856 = vsel %vm827, %v803, 0
      %v859 = vsel %vm827, %v804, 0
      %v862 = vsel %vm827, %v805, 0
      %v865 = vsel %vm827, %v806, 0
      %v868 = vsel %vm827, %v807, 0
      %v871 = vsel %vm827, %v808, 0
      %v874 = vsel %vm827, %v809, 0
      %v877 = vsel %vm827, %v810, 0
      %v880 = vsel %vm827, %v811, 0
      %v883 = vsel %vm827, %v812, 0
      %v886 = vsel %vm827, %v813, 0
      %v889 = vsel %vm827, %v814, 0
      %v892 = vsel %vm827, %v815, 0
      %v895 = vsel %vm827, %v816, 0
      %v898 = vsel %vm827, %v817, 0
      %v901 = vsel %vm827, %v818, 0
      %v904 = vsel %vm827, %v819, 0
      %v907 = vsel %vm827, %v820, 0
      %v910 = vsel %vm827, %v821, 0
      %v913 = vsel %vm827, %v822, 0
      %v916 = vsel %vm827, %v823, 0
      %v919 = vsel %vm827, %v824, 0
      %v922 = vsel %vm827, %v825, 0
      %vm924 = vcmask 1040384
      %v926 = vsel %vm924, %v826, 0
      %928 = vmatprep.subr.bf16.mxu0 0
      %929 = vmatpush1.bf16.msra.mxu0 %v926
      %930 = vmatprep.subr.bf16.mxu0 0
      %931 = vmatpush1.bf16.msra.mxu0 0
      %932 = vmatprep.subr.bf16.mxu0 0
      %933 = vmatpush1.bf16.msra.mxu0 0
      %934 = vmatprep.subr.bf16.mxu0 0
      %935 = vmatpush1.bf16.msra.mxu0 0
      %936 = vmatprep.subr.bf16.mxu0 0
      %937 = vmatpush1.bf16.msra.mxu0 0
      %938 = vmatprep.subr.bf16.mxu0 0
      %939 = vmatpush1.bf16.msra.mxu0 0
      %940 = vmatprep.subr.bf16.mxu0 0
      %941 = vmatpush1.bf16.msra.mxu0 0
      %942 = vmatprep.subr.bf16.mxu0 0
      %943 = vmatpush1.bf16.msra.mxu0 0
      %944 = vmatprep.subr.bf16.mxu0 0
      %945 = vmatpush1.bf16.msra.mxu0 0
      %946 = vmatprep.subr.bf16.mxu0 0
      %947 = vmatpush1.bf16.msra.mxu0 0
      %948 = vmatprep.subr.bf16.mxu0 0
      %949 = vmatpush1.bf16.msra.mxu0 0
      %950 = vmatprep.subr.bf16.mxu0 0
      %951 = vmatpush1.bf16.msra.mxu0 0
      %952 = vmatprep.subr.bf16.mxu0 0
      %953 = vmatpush1.bf16.msra.mxu0 0
      %954 = vmatprep.subr.bf16.mxu0 0
      %955 = vmatpush1.bf16.msra.mxu0 0
      %956 = vmatprep.subr.bf16.mxu0 0
      %957 = vmatpush1.bf16.msra.mxu0 0
      %958 = vmatprep.subr.bf16.mxu0 0
      %959 = vmatpush1.bf16.msra.mxu0 0
      %960 = vmatprep.mubr.bf16.mxu0 0
      %961 = vmatmul.mubr.bf16.gmra.mrb[0].mxu0 %v829
      %v962 = vpop.f32.mrb[0].mxu0
      %v963 = vadd.f32 0.0, %v962
      %v964 = vpop.f32.mrb[0].mxu0
      %v965 = vpop.f32.mrb[0].mxu0
      %v966 = vadd.f32 0.0, %v965
      %v967 = vpop.f32.mrb[0].mxu0
      %968 = vmatprep.mubr.bf16.mxu0 0
      %969 = vmatmul.mubr.bf16.gmra.mrb[0].mxu0 %v832
      %v970 = vpop.f32.mrb[0].mxu0
      %v971 = vadd.f32 0.0, %v970
      %v972 = vpop.f32.mrb[0].mxu0
      %v973 = vpop.f32.mrb[0].mxu0
      %v974 = vadd.f32 0.0, %v973
      %v975 = vpop.f32.mrb[0].mxu0
      %976 = vmatprep.mubr.bf16.mxu0 0
      %977 = vmatmul.mubr.bf16.gmra.mrb[0].mxu0 %v835
      %v978 = vpop.f32.mrb[0].mxu0
      %v979 = vadd.f32 0.0, %v978
      %v980 = vpop.f32.mrb[0].mxu0
      %v981 = vpop.f32.mrb[0].mxu0
      %v982 = vadd.f32 0.0, %v981
      %v983 = vpop.f32.mrb[0].mxu0
      %984 = vmatprep.mubr.bf16.mxu0 0
      %985 = vmatmul.mubr.bf16.gmra.mrb[0].mxu0 %v838
      %v986 = vpop.f32.mrb[0].mxu0
      %v987 = vadd.f32 0.0, %v986
      %v988 = vpop.f32.mrb[0].mxu0
      %v989 = vpop.f32.mrb[0].mxu0
      %v990 = vadd.f32 0.0, %v989
      %v991 = vpop.f32.mrb[0].mxu0
      %992 = vmatprep.mubr.bf16.mxu0 0
      %993 = vmatmul.mubr.bf16.gmra.mrb[0].mxu0 %v841
      %v994 = vpop.f32.mrb[0].mxu0
      %v995 = vadd.f32 0.0, %v994
      %v996 = vpop.f32.mrb[0].mxu0
      %v997 = vpop.f32.mrb[0].mxu0
      %v998 = vadd.f32 0.0, %v997
      %v999 = vpop.f32.mrb[0].mxu0
      %1000 = vmatprep.mubr.bf16.mxu0 0
      %1001 = vmatmul.mubr.bf16.gmra.mrb[0].mxu0 %v844
      %v1002 = vpop.f32.mrb[0].mxu0
      %v1003 = vadd.f32 0.0, %v1002
      %v1004 = vpop.f32.mrb[0].mxu0
      %v1005 = vpop.f32.mrb[0].mxu0
      %v1006 = vadd.f32 0.0, %v1005
      %v1007 = vpop.f32.mrb[0].mxu0
      %1008 = vmatprep.mubr.bf16.mxu0 0
      %1009 = vmatmul.mubr.bf16.gmra.mrb[0].mxu0 %v847
      %v1010 = vpop.f32.mrb[0].mxu0
      %v1011 = vadd.f32 0.0, %v1010
      %v1012 = vpop.f32.mrb[0].mxu0
      %v1013 = vpop.f32.mrb[0].mxu0
      %v1014 = vadd.f32 0.0, %v1013
      %v1015 = vpop.f32.mrb[0].mxu0
      %1016 = vmatprep.mubr.bf16.mxu0 0
      %1017 = vmatmul.mubr.bf16.gmra.mrb[0].mxu0 %v850
      %v1018 = vpop.f32.mrb[0].mxu0
      %v1019 = vadd.f32 0.0, %v1018
      %v1020 = vpop.f32.mrb[0].mxu0
      %v1021 = vpop.f32.mrb[0].mxu0
      %v1022 = vadd.f32 0.0, %v1021
      %v1023 = vpop.f32.mrb[0].mxu0
      %1024 = vmatprep.mubr.bf16.mxu0 0
      %1025 = vmatmul.mubr.bf16.gmra.mrb[0].mxu0 %v853
      %v1026 = vpop.f32.mrb[0].mxu0
      %v1027 = vadd.f32 0.0, %v1026
      %v1028 = vpop.f32.mrb[0].mxu0
      %v1029 = vpop.f32.mrb[0].mxu0
      %v1030 = vadd.f32 0.0, %v1029
      %v1031 = vpop.f32.mrb[0].mxu0
      %1032 = vmatprep.mubr.bf16.mxu0 0
      %1033 = vmatmul.mubr.bf16.gmra.mrb[0].mxu0 %v856
      %v1034 = vpop.f32.mrb[0].mxu0
      %v1035 = vadd.f32 0.0, %v1034
      %v1036 = vpop.f32.mrb[0].mxu0
      %v1037 = vpop.f32.mrb[0].mxu0
      %v1038 = vadd.f32 0.0, %v1037
      %v1039 = vpop.f32.mrb[0].mxu0
      %1040 = vmatprep.mubr.bf16.mxu0 0
      %1041 = vmatmul.mubr.bf16.gmra.mrb[0].mxu0 %v859
      %v1042 = vpop.f32.mrb[0].mxu0
      %v1043 = vadd.f32 0.0, %v1042
      %v1044 = vpop.f32.mrb[0].mxu0
      %v1045 = vpop.f32.mrb[0].mxu0
      %v1046 = vadd.f32 0.0, %v1045
      %v1047 = vpop.f32.mrb[0].mxu0
      %1048 = vmatprep.mubr.bf16.mxu0 0
      %1049 = vmatmul.mubr.bf16.gmra.mrb[0].mxu0 %v862
      %v1050 = vpop.f32.mrb[0].mxu0
      %v1051 = vadd.f32 0.0, %v1050
      %v1052 = vpop.f32.mrb[0].mxu0
      %v1053 = vpop.f32.mrb[0].mxu0
      %v1054 = vadd.f32 0.0, %v1053
      %v1055 = vpop.f32.mrb[0].mxu0
      %1056 = vmatprep.mubr.bf16.mxu0 0
      %1057 = vmatmul.mubr.bf16.gmra.mrb[0].mxu0 %v865
      %v1058 = vpop.f32.mrb[0].mxu0
      %v1059 = vadd.f32 0.0, %v1058
      %v1060 = vpop.f32.mrb[0].mxu0
      %v1061 = vpop.f32.mrb[0].mxu0
      %v1062 = vadd.f32 0.0, %v1061
      %v1063 = vpop.f32.mrb[0].mxu0
      %1064 = vmatprep.mubr.bf16.mxu0 0
      %1065 = vmatmul.mubr.bf16.gmra.mrb[0].mxu0 %v868
      %v1066 = vpop.f32.mrb[0].mxu0
      %v1067 = vadd.f32 0.0, %v1066
      %v1068 = vpop.f32.mrb[0].mxu0
      %v1069 = vpop.f32.mrb[0].mxu0
      %v1070 = vadd.f32 0.0, %v1069
      %v1071 = vpop.f32.mrb[0].mxu0
      %1072 = vmatprep.mubr.bf16.mxu0 0
      %1073 = vmatmul.mubr.bf16.gmra.mrb[0].mxu0 %v871
      %v1074 = vpop.f32.mrb[0].mxu0
      %v1075 = vadd.f32 0.0, %v1074
      %v1076 = vpop.f32.mrb[0].mxu0
      %v1077 = vpop.f32.mrb[0].mxu0
      %v1078 = vadd.f32 0.0, %v1077
      %v1079 = vpop.f32.mrb[0].mxu0
      %1080 = vmatprep.mubr.bf16.mxu0 0
      %1081 = vmatmul.mubr.bf16.gmra.mrb[0].mxu0 %v874
      %v1082 = vpop.f32.mrb[0].mxu0
      %v1083 = vadd.f32 0.0, %v1082
      %v1084 = vpop.f32.mrb[0].mxu0
      %v1085 = vpop.f32.mrb[0].mxu0
      %v1086 = vadd.f32 0.0, %v1085
      %v1087 = vpop.f32.mrb[0].mxu0
      %1088 = vmatprep.mubr.bf16.mxu0 0
      %1089 = vmatmul.mubr.bf16.gmra.mrb[0].mxu0 %v877
      %v1090 = vpop.f32.mrb[0].mxu0
      %v1091 = vadd.f32 0.0, %v1090
      %v1092 = vpop.f32.mrb[0].mxu0
      %v1093 = vpop.f32.mrb[0].mxu0
      %v1094 = vadd.f32 0.0, %v1093
      %v1095 = vpop.f32.mrb[0].mxu0
      %1096 = vmatprep.mubr.bf16.mxu0 0
      %1097 = vmatmul.mubr.bf16.gmra.mrb[0].mxu0 %v880
      %v1098 = vpop.f32.mrb[0].mxu0
      %v1099 = vadd.f32 0.0, %v1098
      %v1100 = vpop.f32.mrb[0].mxu0
      %v1101 = vpop.f32.mrb[0].mxu0
      %v1102 = vadd.f32 0.0, %v1101
      %v1103 = vpop.f32.mrb[0].mxu0
      %1104 = vmatprep.mubr.bf16.mxu0 0
      %1105 = vmatmul.mubr.bf16.gmra.mrb[0].mxu0 %v883
      %v1106 = vpop.f32.mrb[0].mxu0
      %v1107 = vadd.f32 0.0, %v1106
      %v1108 = vpop.f32.mrb[0].mxu0
      %v1109 = vpop.f32.mrb[0].mxu0
      %v1110 = vadd.f32 0.0, %v1109
      %v1111 = vpop.f32.mrb[0].mxu0
      %1112 = vmatprep.mubr.bf16.mxu0 0
      %1113 = vmatmul.mubr.bf16.gmra.mrb[0].mxu0 %v886
      %v1114 = vpop.f32.mrb[0].mxu0
      %v1115 = vadd.f32 0.0, %v1114
      %v1116 = vpop.f32.mrb[0].mxu0
      %v1117 = vpop.f32.mrb[0].mxu0
      %v1118 = vadd.f32 0.0, %v1117
      %v1119 = vpop.f32.mrb[0].mxu0
      %1120 = vmatprep.mubr.bf16.mxu0 0
      %1121 = vmatmul.mubr.bf16.gmra.mrb[0].mxu0 %v889
      %v1122 = vpop.f32.mrb[0].mxu0
      %v1123 = vadd.f32 0.0, %v1122
      %v1124 = vpop.f32.mrb[0].mxu0
      %v1125 = vpop.f32.mrb[0].mxu0
      %v1126 = vadd.f32 0.0, %v1125
      %v1127 = vpop.f32.mrb[0].mxu0
      %1128 = vmatprep.mubr.bf16.mxu0 0
      %1129 = vmatmul.mubr.bf16.gmra.mrb[0].mxu0 %v892
      %v1130 = vpop.f32.mrb[0].mxu0
      %v1131 = vadd.f32 0.0, %v1130
      %v1132 = vpop.f32.mrb[0].mxu0
      %v1133 = vpop.f32.mrb[0].mxu0
      %v1134 = vadd.f32 0.0, %v1133
      %v1135 = vpop.f32.mrb[0].mxu0
      %1136 = vmatprep.mubr.bf16.mxu0 0
      %1137 = vmatmul.mubr.bf16.gmra.mrb[0].mxu0 %v895
      %v1138 = vpop.f32.mrb[0].mxu0
      %v1139 = vadd.f32 0.0, %v1138
      %v1140 = vpop.f32.mrb[0].mxu0
      %v1141 = vpop.f32.mrb[0].mxu0
      %v1142 = vadd.f32 0.0, %v1141
      %v1143 = vpop.f32.mrb[0].mxu0
      %1144 = vmatprep.mubr.bf16.mxu0 0
      %1145 = vmatmul.mubr.bf16.gmra.mrb[0].mxu0 %v898
      %v1146 = vpop.f32.mrb[0].mxu0
      %v1147 = vadd.f32 0.0, %v1146
      %v1148 = vpop.f32.mrb[0].mxu0
      %v1149 = vpop.f32.mrb[0].mxu0
      %v1150 = vadd.f32 0.0, %v1149
      %v1151 = vpop.f32.mrb[0].mxu0
      %1152 = vmatprep.mubr.bf16.mxu0 0
      %1153 = vmatmul.mubr.bf16.gmra.mrb[0].mxu0 %v901
      %v1154 = vpop.f32.mrb[0].mxu0
      %v1155 = vadd.f32 0.0, %v1154
      %v1156 = vpop.f32.mrb[0].mxu0
      %v1157 = vpop.f32.mrb[0].mxu0
      %v1158 = vadd.f32 0.0, %v1157
      %v1159 = vpop.f32.mrb[0].mxu0
      %1160 = vmatprep.mubr.bf16.mxu0 0
      %1161 = vmatmul.mubr.bf16.gmra.mrb[0].mxu0 %v904
      %v1162 = vpop.f32.mrb[0].mxu0
      %v1163 = vadd.f32 0.0, %v1162
      %v1164 = vpop.f32.mrb[0].mxu0
      %v1165 = vpop.f32.mrb[0].mxu0
      %v1166 = vadd.f32 0.0, %v1165
      %v1167 = vpop.f32.mrb[0].mxu0
      %1168 = vmatprep.mubr.bf16.mxu0 0
      %1169 = vmatmul.mubr.bf16.gmra.mrb[0].mxu0 %v907
      %v1170 = vpop.f32.mrb[0].mxu0
      %v1171 = vadd.f32 0.0, %v1170
      %v1172 = vpop.f32.mrb[0].mxu0
      %v1173 = vpop.f32.mrb[0].mxu0
      %v1174 = vadd.f32 0.0, %v1173
      %v1175 = vpop.f32.mrb[0].mxu0
      %1176 = vmatprep.mubr.bf16.mxu0 0
      %1177 = vmatmul.mubr.bf16.gmra.mrb[0].mxu0 %v910
      %v1178 = vpop.f32.mrb[0].mxu0
      %v1179 = vadd.f32 0.0, %v1178
      %v1180 = vpop.f32.mrb[0].mxu0
      %v1181 = vpop.f32.mrb[0].mxu0
      %v1182 = vadd.f32 0.0, %v1181
      %v1183 = vpop.f32.mrb[0].mxu0
      %1184 = vmatprep.mubr.bf16.mxu0 0
      %1185 = vmatmul.mubr.bf16.gmra.mrb[0].mxu0 %v913
      %v1186 = vpop.f32.mrb[0].mxu0
      %v1187 = vadd.f32 0.0, %v1186
      %v1188 = vpop.f32.mrb[0].mxu0
      %v1189 = vpop.f32.mrb[0].mxu0
      %v1190 = vadd.f32 0.0, %v1189
      %v1191 = vpop.f32.mrb[0].mxu0
      %1192 = vmatprep.mubr.bf16.mxu0 0
      %1193 = vmatmul.mubr.bf16.gmra.mrb[0].mxu0 %v916
      %v1194 = vpop.f32.mrb[0].mxu0
      %v1195 = vadd.f32 0.0, %v1194
      %v1196 = vpop.f32.mrb[0].mxu0
      %v1197 = vpop.f32.mrb[0].mxu0
      %v1198 = vadd.f32 0.0, %v1197
      %v1199 = vpop.f32.mrb[0].mxu0
      %1200 = vmatprep.mubr.bf16.mxu0 0
      %1201 = vmatmul.mubr.bf16.gmra.mrb[0].mxu0 %v919
      %v1202 = vpop.f32.mrb[0].mxu0
      %v1203 = vadd.f32 0.0, %v1202
      %v1204 = vpop.f32.mrb[0].mxu0
      %v1205 = vpop.f32.mrb[0].mxu0
      %v1206 = vadd.f32 0.0, %v1205
      %v1207 = vpop.f32.mrb[0].mxu0
      %1208 = vmatprep.mubr.bf16.mxu0 0
      %1209 = vmatmul.mubr.bf16.gmra.mrb[0].mxu0 %v922
      %v1210 = vpop.f32.mrb[0].mxu0
      %v1211 = vadd.f32 0.0, %v1210
      %v1212 = vpop.f32.mrb[0].mxu0
      %v1213 = vpop.f32.mrb[0].mxu0
      %v1214 = vadd.f32 0.0, %v1213
      %v1215 = vpop.f32.mrb[0].mxu0
      %1216 = vdwg.mxu0
      %v1281 = vunpack.c.l.b16 %v278
      %v1282 = vunpack.c.l.b16 %v279
      %v1283 = vunpack.c.l.b16 %v280
      %v1284 = vunpack.c.l.b16 %v281
      %v1285 = vunpack.c.l.b16 %v282
      %v1286 = vunpack.c.l.b16 %v283
      %v1287 = vunpack.c.l.b16 %v284
      %v1288 = vunpack.c.l.b16 %v285
      %v1289 = vunpack.c.l.b16 %v286
      %v1290 = vunpack.c.l.b16 %v287
      %v1291 = vunpack.c.l.b16 %v288
      %v1292 = vunpack.c.l.b16 %v289
      %v1293 = vunpack.c.l.b16 %v290
      %v1294 = vunpack.c.l.b16 %v291
      %v1295 = vunpack.c.l.b16 %v292
      %v1296 = vunpack.c.l.b16 %v293
      %v1297 = vunpack.c.l.b16 %v294
      %v1298 = vunpack.c.l.b16 %v295
      %v1299 = vunpack.c.l.b16 %v296
      %v1300 = vunpack.c.l.b16 %v297
      %v1301 = vunpack.c.l.b16 %v298
      %v1302 = vunpack.c.l.b16 %v299
      %v1303 = vunpack.c.l.b16 %v300
      %v1304 = vunpack.c.l.b16 %v301
      %v1305 = vunpack.c.l.b16 %v302
      %v1306 = vunpack.c.l.b16 %v303
      %v1307 = vunpack.c.l.b16 %v304
      %v1308 = vunpack.c.l.b16 %v305
      %v1309 = vunpack.c.l.b16 %v306
      %v1310 = vunpack.c.l.b16 %v307
      %v1311 = vunpack.c.l.b16 %v308
      %v1312 = vunpack.c.l.b16 %v309
      %v1313 = vunpack.c.l.b16 %v310
      %v1314 = vunpack.c.l.b16 %v311
      %v1315 = vunpack.c.l.b16 %v312
      %v1316 = vunpack.c.l.b16 %v313
      %v1317 = vunpack.c.l.b16 %v314
      %v1318 = vunpack.c.l.b16 %v315
      %v1319 = vunpack.c.l.b16 %v316
      %v1320 = vunpack.c.l.b16 %v317
      %v1321 = vunpack.c.l.b16 %v318
      %v1322 = vunpack.c.l.b16 %v319
      %v1323 = vunpack.c.l.b16 %v320
      %v1324 = vunpack.c.l.b16 %v321
      %v1325 = vunpack.c.l.b16 %v322
      %v1326 = vunpack.c.l.b16 %v323
      %v1327 = vunpack.c.l.b16 %v324
      %v1328 = vunpack.c.l.b16 %v325
      %v1329 = vunpack.c.l.b16 %v326
      %v1330 = vunpack.c.l.b16 %v327
      %v1331 = vunpack.c.l.b16 %v328
      %v1332 = vunpack.c.l.b16 %v329
      %v1333 = vunpack.c.l.b16 %v330
      %v1334 = vunpack.c.l.b16 %v331
      %v1335 = vunpack.c.l.b16 %v332
      %v1336 = vunpack.c.l.b16 %v333
      %v1337 = vunpack.c.l.b16 %v334
      %v1338 = vunpack.c.l.b16 %v335
      %v1339 = vunpack.c.l.b16 %v336
      %v1340 = vunpack.c.l.b16 %v337
      %v1341 = vunpack.c.l.b16 %v338
      %v1342 = vunpack.c.l.b16 %v339
      %v1343 = vunpack.c.l.b16 %v340
      %v1344 = vunpack.c.l.b16 %v341
      %v1345 = vpack.c.b16 %v1282, %v1281
      %v1346 = vpack.c.b16 %v1284, %v1283
      %v1347 = vpack.c.b16 %v1286, %v1285
      %v1348 = vpack.c.b16 %v1288, %v1287
      %v1349 = vpack.c.b16 %v1290, %v1289
      %v1350 = vpack.c.b16 %v1292, %v1291
      %v1351 = vpack.c.b16 %v1294, %v1293
      %v1352 = vpack.c.b16 %v1296, %v1295
      %v1353 = vpack.c.b16 %v1298, %v1297
      %v1354 = vpack.c.b16 %v1300, %v1299
      %v1355 = vpack.c.b16 %v1302, %v1301
      %v1356 = vpack.c.b16 %v1304, %v1303
      %v1357 = vpack.c.b16 %v1306, %v1305
      %v1358 = vpack.c.b16 %v1308, %v1307
      %v1359 = vpack.c.b16 %v1310, %v1309
      %v1360 = vpack.c.b16 %v1312, %v1311
      %v1361 = vpack.c.b16 %v1314, %v1313
      %v1362 = vpack.c.b16 %v1316, %v1315
      %v1363 = vpack.c.b16 %v1318, %v1317
      %v1364 = vpack.c.b16 %v1320, %v1319
      %v1365 = vpack.c.b16 %v1322, %v1321
      %v1366 = vpack.c.b16 %v1324, %v1323
      %v1367 = vpack.c.b16 %v1326, %v1325
      %v1368 = vpack.c.b16 %v1328, %v1327
      %v1369 = vpack.c.b16 %v1330, %v1329
      %v1370 = vpack.c.b16 %v1332, %v1331
      %v1371 = vpack.c.b16 %v1334, %v1333
      %v1372 = vpack.c.b16 %v1336, %v1335
      %v1373 = vpack.c.b16 %v1338, %v1337
      %v1374 = vpack.c.b16 %v1340, %v1339
      %v1375 = vpack.c.b16 %v1342, %v1341
      %v1376 = vpack.c.b16 %v1344, %v1343
      %v1379 = vunpack.c.l.b16 %v342
      %v1380 = vunpack.c.l.b16 %v343
      %v1381 = vpack.c.b16 %v1380, %v1379
      %vm1382 = vcmask 97280
      %v1384 = vsel %vm1382, %v1345, 0
      %v1387 = vsel %vm1382, %v1346, 0
      %v1390 = vsel %vm1382, %v1347, 0
      %v1393 = vsel %vm1382, %v1348, 0
      %v1396 = vsel %vm1382, %v1349, 0
      %v1399 = vsel %vm1382, %v1350, 0
      %v1402 = vsel %vm1382, %v1351, 0
      %v1405 = vsel %vm1382, %v1352, 0
      %v1408 = vsel %vm1382, %v1353, 0
      %v1411 = vsel %vm1382, %v1354, 0
      %v1414 = vsel %vm1382, %v1355, 0
      %v1417 = vsel %vm1382, %v1356, 0
      %v1420 = vsel %vm1382, %v1357, 0
      %v1423 = vsel %vm1382, %v1358, 0
      %v1426 = vsel %vm1382, %v1359, 0
      %v1429 = vsel %vm1382, %v1360, 0
      %v1432 = vsel %vm1382, %v1361, 0
      %v1435 = vsel %vm1382, %v1362, 0
      %v1438 = vsel %vm1382, %v1363, 0
      %v1441 = vsel %vm1382, %v1364, 0
      %v1444 = vsel %vm1382, %v1365, 0
      %v1447 = vsel %vm1382, %v1366, 0
      %v1450 = vsel %vm1382, %v1367, 0
      %v1453 = vsel %vm1382, %v1368, 0
      %v1456 = vsel %vm1382, %v1369, 0
      %v1459 = vsel %vm1382, %v1370, 0
      %v1462 = vsel %vm1382, %v1371, 0
      %v1465 = vsel %vm1382, %v1372, 0
      %v1468 = vsel %vm1382, %v1373, 0
      %v1471 = vsel %vm1382, %v1374, 0
      %v1474 = vsel %vm1382, %v1375, 0
      %v1477 = vsel %vm1382, %v1376, 0
      %vm1479 = vcmask 1045504
      %v1481 = vsel %vm1479, %v1381, 0
      %1483 = vmatprep.subr.bf16.mxu0 0
      %1484 = vmatpush1.bf16.msra.mxu0 %v1481
      %1485 = vmatprep.subr.bf16.mxu0 0
      %1486 = vmatpush1.bf16.msra.mxu0 0
      %1487 = vmatprep.subr.bf16.mxu0 0
      %1488 = vmatpush1.bf16.msra.mxu0 0
      %1489 = vmatprep.subr.bf16.mxu0 0
      %1490 = vmatpush1.bf16.msra.mxu0 0
      %1491 = vmatprep.subr.bf16.mxu0 0
      %1492 = vmatpush1.bf16.msra.mxu0 0
      %1493 = vmatprep.subr.bf16.mxu0 0
      %1494 = vmatpush1.bf16.msra.mxu0 0
      %1495 = vmatprep.subr.bf16.mxu0 0
      %1496 = vmatpush1.bf16.msra.mxu0 0
      %1497 = vmatprep.subr.bf16.mxu0 0
      %1498 = vmatpush1.bf16.msra.mxu0 0
      %1499 = vmatprep.subr.bf16.mxu0 0
      %1500 = vmatpush1.bf16.msra.mxu0 0
      %1501 = vmatprep.subr.bf16.mxu0 0
      %1502 = vmatpush1.bf16.msra.mxu0 0
      %1503 = vmatprep.subr.bf16.mxu0 0
      %1504 = vmatpush1.bf16.msra.mxu0 0
      %1505 = vmatprep.subr.bf16.mxu0 0
      %1506 = vmatpush1.bf16.msra.mxu0 0
      %1507 = vmatprep.subr.bf16.mxu0 0
      %1508 = vmatpush1.bf16.msra.mxu0 0
      %1509 = vmatprep.subr.bf16.mxu0 0
      %1510 = vmatpush1.bf16.msra.mxu0 0
      %1511 = vmatprep.subr.bf16.mxu0 0
      %1512 = vmatpush1.bf16.msra.mxu0 0
      %1513 = vmatprep.subr.bf16.mxu0 0
      %1514 = vmatpush1.bf16.msra.mxu0 0
      %1515 = vmatprep.mubr.bf16.mxu0 0
      %1516 = vmatmul.mubr.bf16.gmra.mrb[0].mxu0 %v1384
      %v1517 = vpop.f32.mrb[0].mxu0
      %v1518 = vadd.f32 %v963, %v1517
      %v1519 = vpop.f32.mrb[0].mxu0
      %v1520 = vpop.f32.mrb[0].mxu0
      %v1521 = vadd.f32 %v966, %v1520
      %v1522 = vpop.f32.mrb[0].mxu0
      %1523 = vmatprep.mubr.bf16.mxu0 0
      %1524 = vmatmul.mubr.bf16.gmra.mrb[0].mxu0 %v1387
      %v1525 = vpop.f32.mrb[0].mxu0
      %v1526 = vadd.f32 %v971, %v1525
      %v1527 = vpop.f32.mrb[0].mxu0
      %v1528 = vpop.f32.mrb[0].mxu0
      %v1529 = vadd.f32 %v974, %v1528
      %v1530 = vpop.f32.mrb[0].mxu0
      %1531 = vmatprep.mubr.bf16.mxu0 0
      %1532 = vmatmul.mubr.bf16.gmra.mrb[0].mxu0 %v1390
      %v1533 = vpop.f32.mrb[0].mxu0
      %v1534 = vadd.f32 %v979, %v1533
      %v1535 = vpop.f32.mrb[0].mxu0
      %v1536 = vpop.f32.mrb[0].mxu0
      %v1537 = vadd.f32 %v982, %v1536
      %v1538 = vpop.f32.mrb[0].mxu0
      %1539 = vmatprep.mubr.bf16.mxu0 0
      %1540 = vmatmul.mubr.bf16.gmra.mrb[0].mxu0 %v1393
      %v1541 = vpop.f32.mrb[0].mxu0
      %v1542 = vadd.f32 %v987, %v1541
      %v1543 = vpop.f32.mrb[0].mxu0
      %v1544 = vpop.f32.mrb[0].mxu0
      %v1545 = vadd.f32 %v990, %v1544
      %v1546 = vpop.f32.mrb[0].mxu0
      %1547 = vmatprep.mubr.bf16.mxu0 0
      %1548 = vmatmul.mubr.bf16.gmra.mrb[0].mxu0 %v1396
      %v1549 = vpop.f32.mrb[0].mxu0
      %v1550 = vadd.f32 %v995, %v1549
      %v1551 = vpop.f32.mrb[0].mxu0
      %v1552 = vpop.f32.mrb[0].mxu0
      %v1553 = vadd.f32 %v998, %v1552
      %v1554 = vpop.f32.mrb[0].mxu0
      %1555 = vmatprep.mubr.bf16.mxu0 0
      %1556 = vmatmul.mubr.bf16.gmra.mrb[0].mxu0 %v1399
      %v1557 = vpop.f32.mrb[0].mxu0
      %v1558 = vadd.f32 %v1003, %v1557
      %v1559 = vpop.f32.mrb[0].mxu0
      %v1560 = vpop.f32.mrb[0].mxu0
      %v1561 = vadd.f32 %v1006, %v1560
      %v1562 = vpop.f32.mrb[0].mxu0
      %1563 = vmatprep.mubr.bf16.mxu0 0
      %1564 = vmatmul.mubr.bf16.gmra.mrb[0].mxu0 %v1402
      %v1565 = vpop.f32.mrb[0].mxu0
      %v1566 = vadd.f32 %v1011, %v1565
      %v1567 = vpop.f32.mrb[0].mxu0
      %v1568 = vpop.f32.mrb[0].mxu0
      %v1569 = vadd.f32 %v1014, %v1568
      %v1570 = vpop.f32.mrb[0].mxu0
      %1571 = vmatprep.mubr.bf16.mxu0 0
      %1572 = vmatmul.mubr.bf16.gmra.mrb[0].mxu0 %v1405
      %v1573 = vpop.f32.mrb[0].mxu0
      %v1574 = vadd.f32 %v1019, %v1573
      %v1575 = vpop.f32.mrb[0].mxu0
      %v1576 = vpop.f32.mrb[0].mxu0
      %v1577 = vadd.f32 %v1022, %v1576
      %v1578 = vpop.f32.mrb[0].mxu0
      %1579 = vmatprep.mubr.bf16.mxu0 0
      %1580 = vmatmul.mubr.bf16.gmra.mrb[0].mxu0 %v1408
      %v1581 = vpop.f32.mrb[0].mxu0
      %v1582 = vadd.f32 %v1027, %v1581
      %v1583 = vpop.f32.mrb[0].mxu0
      %v1584 = vpop.f32.mrb[0].mxu0
      %v1585 = vadd.f32 %v1030, %v1584
      %v1586 = vpop.f32.mrb[0].mxu0
      %1587 = vmatprep.mubr.bf16.mxu0 0
      %1588 = vmatmul.mubr.bf16.gmra.mrb[0].mxu0 %v1411
      %v1589 = vpop.f32.mrb[0].mxu0
      %v1590 = vadd.f32 %v1035, %v1589
      %v1591 = vpop.f32.mrb[0].mxu0
      %v1592 = vpop.f32.mrb[0].mxu0
      %v1593 = vadd.f32 %v1038, %v1592
      %v1594 = vpop.f32.mrb[0].mxu0
      %1595 = vmatprep.mubr.bf16.mxu0 0
      %1596 = vmatmul.mubr.bf16.gmra.mrb[0].mxu0 %v1414
      %v1597 = vpop.f32.mrb[0].mxu0
      %v1598 = vadd.f32 %v1043, %v1597
      %v1599 = vpop.f32.mrb[0].mxu0
      %v1600 = vpop.f32.mrb[0].mxu0
      %v1601 = vadd.f32 %v1046, %v1600
      %v1602 = vpop.f32.mrb[0].mxu0
      %1603 = vmatprep.mubr.bf16.mxu0 0
      %1604 = vmatmul.mubr.bf16.gmra.mrb[0].mxu0 %v1417
      %v1605 = vpop.f32.mrb[0].mxu0
      %v1606 = vadd.f32 %v1051, %v1605
      %v1607 = vpop.f32.mrb[0].mxu0
      %v1608 = vpop.f32.mrb[0].mxu0
      %v1609 = vadd.f32 %v1054, %v1608
      %v1610 = vpop.f32.mrb[0].mxu0
      %1611 = vmatprep.mubr.bf16.mxu0 0
      %1612 = vmatmul.mubr.bf16.gmra.mrb[0].mxu0 %v1420
      %v1613 = vpop.f32.mrb[0].mxu0
      %v1614 = vadd.f32 %v1059, %v1613
      %v1615 = vpop.f32.mrb[0].mxu0
      %v1616 = vpop.f32.mrb[0].mxu0
      %v1617 = vadd.f32 %v1062, %v1616
      %v1618 = vpop.f32.mrb[0].mxu0
      %1619 = vmatprep.mubr.bf16.mxu0 0
      %1620 = vmatmul.mubr.bf16.gmra.mrb[0].mxu0 %v1423
      %v1621 = vpop.f32.mrb[0].mxu0
      %v1622 = vadd.f32 %v1067, %v1621
      %v1623 = vpop.f32.mrb[0].mxu0
      %v1624 = vpop.f32.mrb[0].mxu0
      %v1625 = vadd.f32 %v1070, %v1624
      %v1626 = vpop.f32.mrb[0].mxu0
      %1627 = vmatprep.mubr.bf16.mxu0 0
      %1628 = vmatmul.mubr.bf16.gmra.mrb[0].mxu0 %v1426
      %v1629 = vpop.f32.mrb[0].mxu0
      %v1630 = vadd.f32 %v1075, %v1629
      %v1631 = vpop.f32.mrb[0].mxu0
      %v1632 = vpop.f32.mrb[0].mxu0
      %v1633 = vadd.f32 %v1078, %v1632
      %v1634 = vpop.f32.mrb[0].mxu0
      %1635 = vmatprep.mubr.bf16.mxu0 0
      %1636 = vmatmul.mubr.bf16.gmra.mrb[0].mxu0 %v1429
      %v1637 = vpop.f32.mrb[0].mxu0
      %v1638 = vadd.f32 %v1083, %v1637
      %v1639 = vpop.f32.mrb[0].mxu0
      %v1640 = vpop.f32.mrb[0].mxu0
      %v1641 = vadd.f32 %v1086, %v1640
      %v1642 = vpop.f32.mrb[0].mxu0
      %1643 = vmatprep.mubr.bf16.mxu0 0
      %1644 = vmatmul.mubr.bf16.gmra.mrb[0].mxu0 %v1432
      %v1645 = vpop.f32.mrb[0].mxu0
      %v1646 = vadd.f32 %v1091, %v1645
      %v1647 = vpop.f32.mrb[0].mxu0
      %v1648 = vpop.f32.mrb[0].mxu0
      %v1649 = vadd.f32 %v1094, %v1648
      %v1650 = vpop.f32.mrb[0].mxu0
      %1651 = vmatprep.mubr.bf16.mxu0 0
      %1652 = vmatmul.mubr.bf16.gmra.mrb[0].mxu0 %v1435
      %v1653 = vpop.f32.mrb[0].mxu0
      %v1654 = vadd.f32 %v1099, %v1653
      %v1655 = vpop.f32.mrb[0].mxu0
      %v1656 = vpop.f32.mrb[0].mxu0
      %v1657 = vadd.f32 %v1102, %v1656
      %v1658 = vpop.f32.mrb[0].mxu0
      %1659 = vmatprep.mubr.bf16.mxu0 0
      %1660 = vmatmul.mubr.bf16.gmra.mrb[0].mxu0 %v1438
      %v1661 = vpop.f32.mrb[0].mxu0
      %v1662 = vadd.f32 %v1107, %v1661
      %v1663 = vpop.f32.mrb[0].mxu0
      %v1664 = vpop.f32.mrb[0].mxu0
      %v1665 = vadd.f32 %v1110, %v1664
      %v1666 = vpop.f32.mrb[0].mxu0
      %1667 = vmatprep.mubr.bf16.mxu0 0
      %1668 = vmatmul.mubr.bf16.gmra.mrb[0].mxu0 %v1441
      %v1669 = vpop.f32.mrb[0].mxu0
      %v1670 = vadd.f32 %v1115, %v1669
      %v1671 = vpop.f32.mrb[0].mxu0
      %v1672 = vpop.f32.mrb[0].mxu0
      %v1673 = vadd.f32 %v1118, %v1672
      %v1674 = vpop.f32.mrb[0].mxu0
      %1675 = vmatprep.mubr.bf16.mxu0 0
      %1676 = vmatmul.mubr.bf16.gmra.mrb[0].mxu0 %v1444
      %v1677 = vpop.f32.mrb[0].mxu0
      %v1678 = vadd.f32 %v1123, %v1677
      %v1679 = vpop.f32.mrb[0].mxu0
      %v1680 = vpop.f32.mrb[0].mxu0
      %v1681 = vadd.f32 %v1126, %v1680
      %v1682 = vpop.f32.mrb[0].mxu0
      %1683 = vmatprep.mubr.bf16.mxu0 0
      %1684 = vmatmul.mubr.bf16.gmra.mrb[0].mxu0 %v1447
      %v1685 = vpop.f32.mrb[0].mxu0
      %v1686 = vadd.f32 %v1131, %v1685
      %v1687 = vpop.f32.mrb[0].mxu0
      %v1688 = vpop.f32.mrb[0].mxu0
      %v1689 = vadd.f32 %v1134, %v1688
      %v1690 = vpop.f32.mrb[0].mxu0
      %1691 = vmatprep.mubr.bf16.mxu0 0
      %1692 = vmatmul.mubr.bf16.gmra.mrb[0].mxu0 %v1450
      %v1693 = vpop.f32.mrb[0].mxu0
      %v1694 = vadd.f32 %v1139, %v1693
      %v1695 = vpop.f32.mrb[0].mxu0
      %v1696 = vpop.f32.mrb[0].mxu0
      %v1697 = vadd.f32 %v1142, %v1696
      %v1698 = vpop.f32.mrb[0].mxu0
      %1699 = vmatprep.mubr.bf16.mxu0 0
      %1700 = vmatmul.mubr.bf16.gmra.mrb[0].mxu0 %v1453
      %v1701 = vpop.f32.mrb[0].mxu0
      %v1702 = vadd.f32 %v1147, %v1701
      %v1703 = vpop.f32.mrb[0].mxu0
      %v1704 = vpop.f32.mrb[0].mxu0
      %v1705 = vadd.f32 %v1150, %v1704
      %v1706 = vpop.f32.mrb[0].mxu0
      %1707 = vmatprep.mubr.bf16.mxu0 0
      %1708 = vmatmul.mubr.bf16.gmra.mrb[0].mxu0 %v1456
      %v1709 = vpop.f32.mrb[0].mxu0
      %v1710 = vadd.f32 %v1155, %v1709
      %v1711 = vpop.f32.mrb[0].mxu0
      %v1712 = vpop.f32.mrb[0].mxu0
      %v1713 = vadd.f32 %v1158, %v1712
      %v1714 = vpop.f32.mrb[0].mxu0
      %1715 = vmatprep.mubr.bf16.mxu0 0
      %1716 = vmatmul.mubr.bf16.gmra.mrb[0].mxu0 %v1459
      %v1717 = vpop.f32.mrb[0].mxu0
      %v1718 = vadd.f32 %v1163, %v1717
      %v1719 = vpop.f32.mrb[0].mxu0
      %v1720 = vpop.f32.mrb[0].mxu0
      %v1721 = vadd.f32 %v1166, %v1720
      %v1722 = vpop.f32.mrb[0].mxu0
      %1723 = vmatprep.mubr.bf16.mxu0 0
      %1724 = vmatmul.mubr.bf16.gmra.mrb[0].mxu0 %v1462
      %v1725 = vpop.f32.mrb[0].mxu0
      %v1726 = vadd.f32 %v1171, %v1725
      %v1727 = vpop.f32.mrb[0].mxu0
      %v1728 = vpop.f32.mrb[0].mxu0
      %v1729 = vadd.f32 %v1174, %v1728
      %v1730 = vpop.f32.mrb[0].mxu0
      %1731 = vmatprep.mubr.bf16.mxu0 0
      %1732 = vmatmul.mubr.bf16.gmra.mrb[0].mxu0 %v1465
      %v1733 = vpop.f32.mrb[0].mxu0
      %v1734 = vadd.f32 %v1179, %v1733
      %v1735 = vpop.f32.mrb[0].mxu0
      %v1736 = vpop.f32.mrb[0].mxu0
      %v1737 = vadd.f32 %v1182, %v1736
      %v1738 = vpop.f32.mrb[0].mxu0
      %1739 = vmatprep.mubr.bf16.mxu0 0
      %1740 = vmatmul.mubr.bf16.gmra.mrb[0].mxu0 %v1468
      %v1741 = vpop.f32.mrb[0].mxu0
      %v1742 = vadd.f32 %v1187, %v1741
      %v1743 = vpop.f32.mrb[0].mxu0
      %v1744 = vpop.f32.mrb[0].mxu0
      %v1745 = vadd.f32 %v1190, %v1744
      %v1746 = vpop.f32.mrb[0].mxu0
      %1747 = vmatprep.mubr.bf16.mxu0 0
      %1748 = vmatmul.mubr.bf16.gmra.mrb[0].mxu0 %v1471
      %v1749 = vpop.f32.mrb[0].mxu0
      %v1750 = vadd.f32 %v1195, %v1749
      %v1751 = vpop.f32.mrb[0].mxu0
      %v1752 = vpop.f32.mrb[0].mxu0
      %v1753 = vadd.f32 %v1198, %v1752
      %v1754 = vpop.f32.mrb[0].mxu0
      %1755 = vmatprep.mubr.bf16.mxu0 0
      %1756 = vmatmul.mubr.bf16.gmra.mrb[0].mxu0 %v1474
      %v1757 = vpop.f32.mrb[0].mxu0
      %v1758 = vadd.f32 %v1203, %v1757
      %v1759 = vpop.f32.mrb[0].mxu0
      %v1760 = vpop.f32.mrb[0].mxu0
      %v1761 = vadd.f32 %v1206, %v1760
      %v1762 = vpop.f32.mrb[0].mxu0
      %1763 = vmatprep.mubr.bf16.mxu0 0
      %1764 = vmatmul.mubr.bf16.gmra.mrb[0].mxu0 %v1477
      %v1765 = vpop.f32.mrb[0].mxu0
      %v1766 = vadd.f32 %v1211, %v1765
      %v1767 = vpop.f32.mrb[0].mxu0
      %v1768 = vpop.f32.mrb[0].mxu0
      %v1769 = vadd.f32 %v1214, %v1768
      %v1770 = vpop.f32.mrb[0].mxu0
      %1771 = vdwg.mxu0
      %v1772 = vld [vmem:[%s5] sm:$0x1]
      %v1773 = vlaneseq
      %v1774 = vshrl.u32 %v1773, 7
      %v1775 = vsub.s32 0, %v1774
      %v1776 = vrot.slane %v1772, %v1775
      %v1777 = vadd.f32 %v1518, %v1776
      %v1778 = vadd.f32 %v1521, %v1776
      %v1779 = vadd.f32 %v1526, %v1776
      %v1780 = vadd.f32 %v1529, %v1776
      %v1781 = vadd.f32 %v1534, %v1776
      %v1782 = vadd.f32 %v1537, %v1776
      %v1783 = vadd.f32 %v1542, %v1776
      %v1784 = vadd.f32 %v1545, %v1776
      %v1785 = vadd.f32 %v1550, %v1776
      %v1786 = vadd.f32 %v1553, %v1776
      %v1787 = vadd.f32 %v1558, %v1776
      %v1788 = vadd.f32 %v1561, %v1776
      %v1789 = vadd.f32 %v1566, %v1776
      %v1790 = vadd.f32 %v1569, %v1776
      %v1791 = vadd.f32 %v1574, %v1776
      %v1792 = vadd.f32 %v1577, %v1776
      %v1793 = vadd.f32 %v1582, %v1776
      %v1794 = vadd.f32 %v1585, %v1776
      %v1795 = vadd.f32 %v1590, %v1776
      %v1796 = vadd.f32 %v1593, %v1776
      %v1797 = vadd.f32 %v1598, %v1776
      %v1798 = vadd.f32 %v1601, %v1776
      %v1799 = vadd.f32 %v1606, %v1776
      %v1800 = vadd.f32 %v1609, %v1776
      %v1801 = vadd.f32 %v1614, %v1776
      %v1802 = vadd.f32 %v1617, %v1776
      %v1803 = vadd.f32 %v1622, %v1776
      %v1804 = vadd.f32 %v1625, %v1776
      %v1805 = vadd.f32 %v1630, %v1776
      %v1806 = vadd.f32 %v1633, %v1776
      %v1807 = vadd.f32 %v1638, %v1776
      %v1808 = vadd.f32 %v1641, %v1776
      %v1809 = vadd.f32 %v1646, %v1776
      %v1810 = vadd.f32 %v1649, %v1776
      %v1811 = vadd.f32 %v1654, %v1776
      %v1812 = vadd.f32 %v1657, %v1776
      %v1813 = vadd.f32 %v1662, %v1776
      %v1814 = vadd.f32 %v1665, %v1776
      %v1815 = vadd.f32 %v1670, %v1776
      %v1816 = vadd.f32 %v1673, %v1776
      %v1817 = vadd.f32 %v1678, %v1776
      %v1818 = vadd.f32 %v1681, %v1776
      %v1819 = vadd.f32 %v1686, %v1776
      %v1820 = vadd.f32 %v1689, %v1776
      %v1821 = vadd.f32 %v1694, %v1776
      %v1822 = vadd.f32 %v1697, %v1776
      %v1823 = vadd.f32 %v1702, %v1776
      %v1824 = vadd.f32 %v1705, %v1776
      %v1825 = vadd.f32 %v1710, %v1776
      %v1826 = vadd.f32 %v1713, %v1776
      %v1827 = vadd.f32 %v1718, %v1776
      %v1828 = vadd.f32 %v1721, %v1776
      %v1829 = vadd.f32 %v1726, %v1776
      %v1830 = vadd.f32 %v1729, %v1776
      %v1831 = vadd.f32 %v1734, %v1776
      %v1832 = vadd.f32 %v1737, %v1776
      %v1833 = vadd.f32 %v1742, %v1776
      %v1834 = vadd.f32 %v1745, %v1776
      %v1835 = vadd.f32 %v1750, %v1776
      %v1836 = vadd.f32 %v1753, %v1776
      %v1837 = vadd.f32 %v1758, %v1776
      %v1838 = vadd.f32 %v1761, %v1776
      %v1839 = vadd.f32 %v1766, %v1776
      %v1840 = vadd.f32 %v1769, %v1776
      %v1841 = vmax.f32 %v1777, 0.0
      %v1842 = vmax.f32 %v1778, 0.0
      %v1843 = vmax.f32 %v1779, 0.0
      %v1844 = vmax.f32 %v1780, 0.0
      %v1845 = vmax.f32 %v1781, 0.0
      %v1846 = vmax.f32 %v1782, 0.0
      %v1847 = vmax.f32 %v1783, 0.0
      %v1848 = vmax.f32 %v1784, 0.0
      %v1849 = vmax.f32 %v1785, 0.0
      %v1850 = vmax.f32 %v1786, 0.0
      %v1851 = vmax.f32 %v1787, 0.0
      %v1852 = vmax.f32 %v1788, 0.0
      %v1853 = vmax.f32 %v1789, 0.0
      %v1854 = vmax.f32 %v1790, 0.0
      %v1855 = vmax.f32 %v1791, 0.0
      %v1856 = vmax.f32 %v1792, 0.0
      %v1857 = vmax.f32 %v1793, 0.0
      %v1858 = vmax.f32 %v1794, 0.0
      %v1859 = vmax.f32 %v1795, 0.0
      %v1860 = vmax.f32 %v1796, 0.0
      %v1861 = vmax.f32 %v1797, 0.0
      %v1862 = vmax.f32 %v1798, 0.0
      %v1863 = vmax.f32 %v1799, 0.0
      %v1864 = vmax.f32 %v1800, 0.0
      %v1865 = vmax.f32 %v1801, 0.0
      %v1866 = vmax.f32 %v1802, 0.0
      %v1867 = vmax.f32 %v1803, 0.0
      %v1868 = vmax.f32 %v1804, 0.0
      %v1869 = vmax.f32 %v1805, 0.0
      %v1870 = vmax.f32 %v1806, 0.0
      %v1871 = vmax.f32 %v1807, 0.0
      %v1872 = vmax.f32 %v1808, 0.0
      %v1873 = vmax.f32 %v1809, 0.0
      %v1874 = vmax.f32 %v1810, 0.0
      %v1875 = vmax.f32 %v1811, 0.0
      %v1876 = vmax.f32 %v1812, 0.0
      %v1877 = vmax.f32 %v1813, 0.0
      %v1878 = vmax.f32 %v1814, 0.0
      %v1879 = vmax.f32 %v1815, 0.0
      %v1880 = vmax.f32 %v1816, 0.0
      %v1881 = vmax.f32 %v1817, 0.0
      %v1882 = vmax.f32 %v1818, 0.0
      %v1883 = vmax.f32 %v1819, 0.0
      %v1884 = vmax.f32 %v1820, 0.0
      %v1885 = vmax.f32 %v1821, 0.0
      %v1886 = vmax.f32 %v1822, 0.0
      %v1887 = vmax.f32 %v1823, 0.0
      %v1888 = vmax.f32 %v1824, 0.0
      %v1889 = vmax.f32 %v1825, 0.0
      %v1890 = vmax.f32 %v1826, 0.0
      %v1891 = vmax.f32 %v1827, 0.0
      %v1892 = vmax.f32 %v1828, 0.0
      %v1893 = vmax.f32 %v1829, 0.0
      %v1894 = vmax.f32 %v1830, 0.0
      %v1895 = vmax.f32 %v1831, 0.0
      %v1896 = vmax.f32 %v1832, 0.0
      %v1897 = vmax.f32 %v1833, 0.0
      %v1898 = vmax.f32 %v1834, 0.0
      %v1899 = vmax.f32 %v1835, 0.0
      %v1900 = vmax.f32 %v1836, 0.0
      %v1901 = vmax.f32 %v1837, 0.0
      %v1902 = vmax.f32 %v1838, 0.0
      %v1903 = vmax.f32 %v1839, 0.0
      %v1904 = vmax.f32 %v1840, 0.0
      %v1905 = vpack.c.bf16 %v1842, %v1841
      %v1906 = vpack.c.bf16 %v1844, %v1843
      %v1907 = vpack.c.bf16 %v1846, %v1845
      %v1908 = vpack.c.bf16 %v1848, %v1847
      %v1909 = vpack.c.bf16 %v1850, %v1849
      %v1910 = vpack.c.bf16 %v1852, %v1851
      %v1911 = vpack.c.bf16 %v1854, %v1853
      %v1912 = vpack.c.bf16 %v1856, %v1855
      %v1913 = vpack.c.bf16 %v1858, %v1857
      %v1914 = vpack.c.bf16 %v1860, %v1859
      %v1915 = vpack.c.bf16 %v1862, %v1861
      %v1916 = vpack.c.bf16 %v1864, %v1863
      %v1917 = vpack.c.bf16 %v1866, %v1865
      %v1918 = vpack.c.bf16 %v1868, %v1867
      %v1919 = vpack.c.bf16 %v1870, %v1869
      %v1920 = vpack.c.bf16 %v1872, %v1871
      %v1921 = vpack.c.bf16 %v1874, %v1873
      %v1922 = vpack.c.bf16 %v1876, %v1875
      %v1923 = vpack.c.bf16 %v1878, %v1877
      %v1924 = vpack.c.bf16 %v1880, %v1879
      %v1925 = vpack.c.bf16 %v1882, %v1881
      %v1926 = vpack.c.bf16 %v1884, %v1883
      %v1927 = vpack.c.bf16 %v1886, %v1885
      %v1928 = vpack.c.bf16 %v1888, %v1887
      %v1929 = vpack.c.bf16 %v1890, %v1889
      %v1930 = vpack.c.bf16 %v1892, %v1891
      %v1931 = vpack.c.bf16 %v1894, %v1893
      %v1932 = vpack.c.bf16 %v1896, %v1895
      %v1933 = vpack.c.bf16 %v1898, %v1897
      %v1934 = vpack.c.bf16 %v1900, %v1899
      %v1935 = vpack.c.bf16 %v1902, %v1901
      %v1936 = vpack.c.bf16 %v1904, %v1903
      %v1937 = vld [vmem:[%s4] sm:$0xf]
      %v1938 = vld [vmem:[%s4 + $0x4] sm:$0xf]
      %v1939 = vld [vmem:[%s4 + $0x8] sm:$0xf]
      %v1940 = vld [vmem:[%s4 + $0xc] sm:$0xf]
      %v1941 = vld [vmem:[%s5 + $0x1] sm:$0x1]
      %v1942 = vlaneseq
      %v1943 = vshrl.u32 %v1942, 7
      %v1944 = vsub.s32 0, %v1943
      %v1945 = vrot.slane %v1941, %v1944
      %v1950 = vunpack.c.l.b16 %v1937
      %v1951 = vunpack.c.l.b16 %v1938
      %v1952 = vunpack.c.l.b16 %v1939
      %v1953 = vunpack.c.l.b16 %v1940
      %v1954 = vpack.c.b16 %v1951, %v1950
      %v1955 = vpack.c.b16 %v1953, %v1952
      %vm1958 = vcmask 261120
      %v1960 = vsel %vm1958, %v1905, 0
      %v1963 = vsel %vm1958, %v1906, 0
      %v1966 = vsel %vm1958, %v1907, 0
      %v1969 = vsel %vm1958, %v1908, 0
      %v1972 = vsel %vm1958, %v1909, 0
      %v1975 = vsel %vm1958, %v1910, 0
      %v1978 = vsel %vm1958, %v1911, 0
      %v1981 = vsel %vm1958, %v1912, 0
      %v1984 = vsel %vm1958, %v1913, 0
      %v1987 = vsel %vm1958, %v1914, 0
      %v1990 = vsel %vm1958, %v1915, 0
      %v1993 = vsel %vm1958, %v1916, 0
      %v1996 = vsel %vm1958, %v1917, 0
      %v1999 = vsel %vm1958, %v1918, 0
      %v2002 = vsel %vm1958, %v1919, 0
      %v2005 = vsel %vm1958, %v1920, 0
      %v2008 = vsel %vm1958, %v1921, 0
      %v2011 = vsel %vm1958, %v1922, 0
      %v2014 = vsel %vm1958, %v1923, 0
      %v2017 = vsel %vm1958, %v1924, 0
      %v2020 = vsel %vm1958, %v1925, 0
      %v2023 = vsel %vm1958, %v1926, 0
      %v2026 = vsel %vm1958, %v1927, 0
      %v2029 = vsel %vm1958, %v1928, 0
      %v2032 = vsel %vm1958, %v1929, 0
      %v2035 = vsel %vm1958, %v1930, 0
      %v2038 = vsel %vm1958, %v1931, 0
      %v2041 = vsel %vm1958, %v1932, 0
      %v2044 = vsel %vm1958, %v1933, 0
      %v2047 = vsel %vm1958, %v1934, 0
      %v2050 = vsel %vm1958, %v1935, 0
      %v2053 = vsel %vm1958, %v1936, 0
      %2055 = vmatprep.subr.bf16.mxu0 0
      %2056 = vmatpush1.bf16.msra.mxu0 %v1954
      %2057 = vmatprep.subr.bf16.mxu0 0
      %2058 = vmatpush1.bf16.msra.mxu0 %v1955
      %2059 = vmatprep.subr.bf16.mxu0 0
      %2060 = vmatpush1.bf16.msra.mxu0 0
      %2061 = vmatprep.subr.bf16.mxu0 0
      %2062 = vmatpush1.bf16.msra.mxu0 0
      %2063 = vmatprep.subr.bf16.mxu0 0
      %2064 = vmatpush1.bf16.msra.mxu0 0
      %2065 = vmatprep.subr.bf16.mxu0 0
      %2066 = vmatpush1.bf16.msra.mxu0 0
      %2067 = vmatprep.subr.bf16.mxu0 0
      %2068 = vmatpush1.bf16.msra.mxu0 0
      %2069 = vmatprep.subr.bf16.mxu0 0
      %2070 = vmatpush1.bf16.msra.mxu0 0
      %2071 = vmatprep.subr.bf16.mxu0 0
      %2072 = vmatpush1.bf16.msra.mxu0 0
      %2073 = vmatprep.subr.bf16.mxu0 0
      %2074 = vmatpush1.bf16.msra.mxu0 0
      %2075 = vmatprep.subr.bf16.mxu0 0
      %2076 = vmatpush1.bf16.msra.mxu0 0
      %2077 = vmatprep.subr.bf16.mxu0 0
      %2078 = vmatpush1.bf16.msra.mxu0 0
      %2079 = vmatprep.subr.bf16.mxu0 0
      %2080 = vmatpush1.bf16.msra.mxu0 0
      %2081 = vmatprep.subr.bf16.mxu0 0
      %2082 = vmatpush1.bf16.msra.mxu0 0
      %2083 = vmatprep.subr.bf16.mxu0 0
      %2084 = vmatpush1.bf16.msra.mxu0 0
      %2085 = vmatprep.subr.bf16.mxu0 0
      %2086 = vmatpush1.bf16.msra.mxu0 0
      %2087 = vmatprep.mubr.bf16.mxu0 0
      %2088 = vmatmul.mubr.bf16.gmra.mrb[0].mxu0 %v1960
      %v2089 = vpop.f32.mrb[0].mxu0
      %v2090 = vadd.f32 %v1945, %v2089
      %v2091 = vpop.f32.mrb[0].mxu0
      %v2092 = vpop.f32.mrb[0].mxu0
      %v2093 = vadd.f32 %v1945, %v2092
      %v2094 = vpop.f32.mrb[0].mxu0
      %2095 = vmatprep.mubr.bf16.mxu0 0
      %2096 = vmatmul.mubr.bf16.gmra.mrb[0].mxu0 %v1963
      %v2097 = vpop.f32.mrb[0].mxu0
      %v2098 = vadd.f32 %v1945, %v2097
      %v2099 = vpop.f32.mrb[0].mxu0
      %v2100 = vpop.f32.mrb[0].mxu0
      %v2101 = vadd.f32 %v1945, %v2100
      %v2102 = vpop.f32.mrb[0].mxu0
      %2103 = vmatprep.mubr.bf16.mxu0 0
      %2104 = vmatmul.mubr.bf16.gmra.mrb[0].mxu0 %v1966
      %v2105 = vpop.f32.mrb[0].mxu0
      %v2106 = vadd.f32 %v1945, %v2105
      %v2107 = vpop.f32.mrb[0].mxu0
      %v2108 = vpop.f32.mrb[0].mxu0
      %v2109 = vadd.f32 %v1945, %v2108
      %v2110 = vpop.f32.mrb[0].mxu0
      %2111 = vmatprep.mubr.bf16.mxu0 0
      %2112 = vmatmul.mubr.bf16.gmra.mrb[0].mxu0 %v1969
      %v2113 = vpop.f32.mrb[0].mxu0
      %v2114 = vadd.f32 %v1945, %v2113
      %v2115 = vpop.f32.mrb[0].mxu0
      %v2116 = vpop.f32.mrb[0].mxu0
      %v2117 = vadd.f32 %v1945, %v2116
      %v2118 = vpop.f32.mrb[0].mxu0
      %2119 = vmatprep.mubr.bf16.mxu0 0
      %2120 = vmatmul.mubr.bf16.gmra.mrb[0].mxu0 %v1972
      %v2121 = vpop.f32.mrb[0].mxu0
      %v2122 = vadd.f32 %v1945, %v2121
      %v2123 = vpop.f32.mrb[0].mxu0
      %v2124 = vpop.f32.mrb[0].mxu0
      %v2125 = vadd.f32 %v1945, %v2124
      %v2126 = vpop.f32.mrb[0].mxu0
      %2127 = vmatprep.mubr.bf16.mxu0 0
      %2128 = vmatmul.mubr.bf16.gmra.mrb[0].mxu0 %v1975
      %v2129 = vpop.f32.mrb[0].mxu0
      %v2130 = vadd.f32 %v1945, %v2129
      %v2131 = vpop.f32.mrb[0].mxu0
      %v2132 = vpop.f32.mrb[0].mxu0
      %v2133 = vadd.f32 %v1945, %v2132
      %v2134 = vpop.f32.mrb[0].mxu0
      %2135 = vmatprep.mubr.bf16.mxu0 0
      %2136 = vmatmul.mubr.bf16.gmra.mrb[0].mxu0 %v1978
      %v2137 = vpop.f32.mrb[0].mxu0
      %v2138 = vadd.f32 %v1945, %v2137
      %v2139 = vpop.f32.mrb[0].mxu0
      %v2140 = vpop.f32.mrb[0].mxu0
      %v2141 = vadd.f32 %v1945, %v2140
      %v2142 = vpop.f32.mrb[0].mxu0
      %2143 = vmatprep.mubr.bf16.mxu0 0
      %2144 = vmatmul.mubr.bf16.gmra.mrb[0].mxu0 %v1981
      %v2145 = vpop.f32.mrb[0].mxu0
      %v2146 = vadd.f32 %v1945, %v2145
      %v2147 = vpop.f32.mrb[0].mxu0
      %v2148 = vpop.f32.mrb[0].mxu0
      %v2149 = vadd.f32 %v1945, %v2148
      %v2150 = vpop.f32.mrb[0].mxu0
      %2151 = vmatprep.mubr.bf16.mxu0 0
      %2152 = vmatmul.mubr.bf16.gmra.mrb[0].mxu0 %v1984
      %v2153 = vpop.f32.mrb[0].mxu0
      %v2154 = vadd.f32 %v1945, %v2153
      %v2155 = vpop.f32.mrb[0].mxu0
      %v2156 = vpop.f32.mrb[0].mxu0
      %v2157 = vadd.f32 %v1945, %v2156
      %v2158 = vpop.f32.mrb[0].mxu0
      %2159 = vmatprep.mubr.bf16.mxu0 0
      %2160 = vmatmul.mubr.bf16.gmra.mrb[0].mxu0 %v1987
      %v2161 = vpop.f32.mrb[0].mxu0
      %v2162 = vadd.f32 %v1945, %v2161
      %v2163 = vpop.f32.mrb[0].mxu0
      %v2164 = vpop.f32.mrb[0].mxu0
      %v2165 = vadd.f32 %v1945, %v2164
      %v2166 = vpop.f32.mrb[0].mxu0
      %2167 = vmatprep.mubr.bf16.mxu0 0
      %2168 = vmatmul.mubr.bf16.gmra.mrb[0].mxu0 %v1990
      %v2169 = vpop.f32.mrb[0].mxu0
      %v2170 = vadd.f32 %v1945, %v2169
      %v2171 = vpop.f32.mrb[0].mxu0
      %v2172 = vpop.f32.mrb[0].mxu0
      %v2173 = vadd.f32 %v1945, %v2172
      %v2174 = vpop.f32.mrb[0].mxu0
      %2175 = vmatprep.mubr.bf16.mxu0 0
      %2176 = vmatmul.mubr.bf16.gmra.mrb[0].mxu0 %v1993
      %v2177 = vpop.f32.mrb[0].mxu0
      %v2178 = vadd.f32 %v1945, %v2177
      %v2179 = vpop.f32.mrb[0].mxu0
      %v2180 = vpop.f32.mrb[0].mxu0
      %v2181 = vadd.f32 %v1945, %v2180
      %v2182 = vpop.f32.mrb[0].mxu0
      %2183 = vmatprep.mubr.bf16.mxu0 0
      %2184 = vmatmul.mubr.bf16.gmra.mrb[0].mxu0 %v1996
      %v2185 = vpop.f32.mrb[0].mxu0
      %v2186 = vadd.f32 %v1945, %v2185
      %v2187 = vpop.f32.mrb[0].mxu0
      %v2188 = vpop.f32.mrb[0].mxu0
      %v2189 = vadd.f32 %v1945, %v2188
      %v2190 = vpop.f32.mrb[0].mxu0
      %2191 = vmatprep.mubr.bf16.mxu0 0
      %2192 = vmatmul.mubr.bf16.gmra.mrb[0].mxu0 %v1999
      %v2193 = vpop.f32.mrb[0].mxu0
      %v2194 = vadd.f32 %v1945, %v2193
      %v2195 = vpop.f32.mrb[0].mxu0
      %v2196 = vpop.f32.mrb[0].mxu0
      %v2197 = vadd.f32 %v1945, %v2196
      %v2198 = vpop.f32.mrb[0].mxu0
      %2199 = vmatprep.mubr.bf16.mxu0 0
      %2200 = vmatmul.mubr.bf16.gmra.mrb[0].mxu0 %v2002
      %v2201 = vpop.f32.mrb[0].mxu0
      %v2202 = vadd.f32 %v1945, %v2201
      %v2203 = vpop.f32.mrb[0].mxu0
      %v2204 = vpop.f32.mrb[0].mxu0
      %v2205 = vadd.f32 %v1945, %v2204
      %v2206 = vpop.f32.mrb[0].mxu0
      %2207 = vmatprep.mubr.bf16.mxu0 0
      %2208 = vmatmul.mubr.bf16.gmra.mrb[0].mxu0 %v2005
      %v2209 = vpop.f32.mrb[0].mxu0
      %v2210 = vadd.f32 %v1945, %v2209
      %v2211 = vpop.f32.mrb[0].mxu0
      %v2212 = vpop.f32.mrb[0].mxu0
      %v2213 = vadd.f32 %v1945, %v2212
      %v2214 = vpop.f32.mrb[0].mxu0
      %2215 = vmatprep.mubr.bf16.mxu0 0
      %2216 = vmatmul.mubr.bf16.gmra.mrb[0].mxu0 %v2008
      %v2217 = vpop.f32.mrb[0].mxu0
      %v2218 = vadd.f32 %v1945, %v2217
      %v2219 = vpop.f32.mrb[0].mxu0
      %v2220 = vpop.f32.mrb[0].mxu0
      %v2221 = vadd.f32 %v1945, %v2220
      %v2222 = vpop.f32.mrb[0].mxu0
      %2223 = vmatprep.mubr.bf16.mxu0 0
      %2224 = vmatmul.mubr.bf16.gmra.mrb[0].mxu0 %v2011
      %v2225 = vpop.f32.mrb[0].mxu0
      %v2226 = vadd.f32 %v1945, %v2225
      %v2227 = vpop.f32.mrb[0].mxu0
      %v2228 = vpop.f32.mrb[0].mxu0
      %v2229 = vadd.f32 %v1945, %v2228
      %v2230 = vpop.f32.mrb[0].mxu0
      %2231 = vmatprep.mubr.bf16.mxu0 0
      %2232 = vmatmul.mubr.bf16.gmra.mrb[0].mxu0 %v2014
      %v2233 = vpop.f32.mrb[0].mxu0
      %v2234 = vadd.f32 %v1945, %v2233
      %v2235 = vpop.f32.mrb[0].mxu0
      %v2236 = vpop.f32.mrb[0].mxu0
      %v2237 = vadd.f32 %v1945, %v2236
      %v2238 = vpop.f32.mrb[0].mxu0
      %2239 = vmatprep.mubr.bf16.mxu0 0
      %2240 = vmatmul.mubr.bf16.gmra.mrb[0].mxu0 %v2017
      %v2241 = vpop.f32.mrb[0].mxu0
      %v2242 = vadd.f32 %v1945, %v2241
      %v2243 = vpop.f32.mrb[0].mxu0
      %v2244 = vpop.f32.mrb[0].mxu0
      %v2245 = vadd.f32 %v1945, %v2244
      %v2246 = vpop.f32.mrb[0].mxu0
      %2247 = vmatprep.mubr.bf16.mxu0 0
      %2248 = vmatmul.mubr.bf16.gmra.mrb[0].mxu0 %v2020
      %v2249 = vpop.f32.mrb[0].mxu0
      %v2250 = vadd.f32 %v1945, %v2249
      %v2251 = vpop.f32.mrb[0].mxu0
      %v2252 = vpop.f32.mrb[0].mxu0
      %v2253 = vadd.f32 %v1945, %v2252
      %v2254 = vpop.f32.mrb[0].mxu0
      %2255 = vmatprep.mubr.bf16.mxu0 0
      %2256 = vmatmul.mubr.bf16.gmra.mrb[0].mxu0 %v2023
      %v2257 = vpop.f32.mrb[0].mxu0
      %v2258 = vadd.f32 %v1945, %v2257
      %v2259 = vpop.f32.mrb[0].mxu0
      %v2260 = vpop.f32.mrb[0].mxu0
      %v2261 = vadd.f32 %v1945, %v2260
      %v2262 = vpop.f32.mrb[0].mxu0
      %2263 = vmatprep.mubr.bf16.mxu0 0
      %2264 = vmatmul.mubr.bf16.gmra.mrb[0].mxu0 %v2026
      %v2265 = vpop.f32.mrb[0].mxu0
      %v2266 = vadd.f32 %v1945, %v2265
      %v2267 = vpop.f32.mrb[0].mxu0
      %v2268 = vpop.f32.mrb[0].mxu0
      %v2269 = vadd.f32 %v1945, %v2268
      %v2270 = vpop.f32.mrb[0].mxu0
      %2271 = vmatprep.mubr.bf16.mxu0 0
      %2272 = vmatmul.mubr.bf16.gmra.mrb[0].mxu0 %v2029
      %v2273 = vpop.f32.mrb[0].mxu0
      %v2274 = vadd.f32 %v1945, %v2273
      %v2275 = vpop.f32.mrb[0].mxu0
      %v2276 = vpop.f32.mrb[0].mxu0
      %v2277 = vadd.f32 %v1945, %v2276
      %v2278 = vpop.f32.mrb[0].mxu0
      %2279 = vmatprep.mubr.bf16.mxu0 0
      %2280 = vmatmul.mubr.bf16.gmra.mrb[0].mxu0 %v2032
      %v2281 = vpop.f32.mrb[0].mxu0
      %v2282 = vadd.f32 %v1945, %v2281
      %v2283 = vpop.f32.mrb[0].mxu0
      %v2284 = vpop.f32.mrb[0].mxu0
      %v2285 = vadd.f32 %v1945, %v2284
      %v2286 = vpop.f32.mrb[0].mxu0
      %2287 = vmatprep.mubr.bf16.mxu0 0
      %2288 = vmatmul.mubr.bf16.gmra.mrb[0].mxu0 %v2035
      %v2289 = vpop.f32.mrb[0].mxu0
      %v2290 = vadd.f32 %v1945, %v2289
      %v2291 = vpop.f32.mrb[0].mxu0
      %v2292 = vpop.f32.mrb[0].mxu0
      %v2293 = vadd.f32 %v1945, %v2292
      %v2294 = vpop.f32.mrb[0].mxu0
      %2295 = vmatprep.mubr.bf16.mxu0 0
      %2296 = vmatmul.mubr.bf16.gmra.mrb[0].mxu0 %v2038
      %v2297 = vpop.f32.mrb[0].mxu0
      %v2298 = vadd.f32 %v1945, %v2297
      %v2299 = vpop.f32.mrb[0].mxu0
      %v2300 = vpop.f32.mrb[0].mxu0
      %v2301 = vadd.f32 %v1945, %v2300
      %v2302 = vpop.f32.mrb[0].mxu0
      %2303 = vmatprep.mubr.bf16.mxu0 0
      %2304 = vmatmul.mubr.bf16.gmra.mrb[0].mxu0 %v2041
      %v2305 = vpop.f32.mrb[0].mxu0
      %v2306 = vadd.f32 %v1945, %v2305
      %v2307 = vpop.f32.mrb[0].mxu0
      %v2308 = vpop.f32.mrb[0].mxu0
      %v2309 = vadd.f32 %v1945, %v2308
      %v2310 = vpop.f32.mrb[0].mxu0
      %2311 = vmatprep.mubr.bf16.mxu0 0
      %2312 = vmatmul.mubr.bf16.gmra.mrb[0].mxu0 %v2044
      %v2313 = vpop.f32.mrb[0].mxu0
      %v2314 = vadd.f32 %v1945, %v2313
      %v2315 = vpop.f32.mrb[0].mxu0
      %v2316 = vpop.f32.mrb[0].mxu0
      %v2317 = vadd.f32 %v1945, %v2316
      %v2318 = vpop.f32.mrb[0].mxu0
      %2319 = vmatprep.mubr.bf16.mxu0 0
      %2320 = vmatmul.mubr.bf16.gmra.mrb[0].mxu0 %v2047
      %v2321 = vpop.f32.mrb[0].mxu0
      %v2322 = vadd.f32 %v1945, %v2321
      %v2323 = vpop.f32.mrb[0].mxu0
      %v2324 = vpop.f32.mrb[0].mxu0
      %v2325 = vadd.f32 %v1945, %v2324
      %v2326 = vpop.f32.mrb[0].mxu0
      %2327 = vmatprep.mubr.bf16.mxu0 0
      %2328 = vmatmul.mubr.bf16.gmra.mrb[0].mxu0 %v2050
      %v2329 = vpop.f32.mrb[0].mxu0
      %v2330 = vadd.f32 %v1945, %v2329
      %v2331 = vpop.f32.mrb[0].mxu0
      %v2332 = vpop.f32.mrb[0].mxu0
      %v2333 = vadd.f32 %v1945, %v2332
      %v2334 = vpop.f32.mrb[0].mxu0
      %2335 = vmatprep.mubr.bf16.mxu0 0
      %2336 = vmatmul.mubr.bf16.gmra.mrb[0].mxu0 %v2053
      %v2337 = vpop.f32.mrb[0].mxu0
      %v2338 = vadd.f32 %v1945, %v2337
      %v2339 = vpop.f32.mrb[0].mxu0
      %v2340 = vpop.f32.mrb[0].mxu0
      %v2341 = vadd.f32 %v1945, %v2340
      %v2342 = vpop.f32.mrb[0].mxu0
      %2343 = vdwg.mxu0
      %2344 = vst.msk [vmem:[%s275] sm:$0xff] %vm1958, %v2090
      %2345 = vst.msk [vmem:[%s275 + $0x8] sm:$0xff] %vm1958, %v2093
      %2346 = vst.msk [vmem:[%s275 + $0x10] sm:$0xff] %vm1958, %v2098
      %2347 = vst.msk [vmem:[%s275 + $0x18] sm:$0xff] %vm1958, %v2101
      %2348 = vst.msk [vmem:[%s275 + $0x20] sm:$0xff] %vm1958, %v2106
      %2349 = vst.msk [vmem:[%s275 + $0x28] sm:$0xff] %vm1958, %v2109
      %2350 = vst.msk [vmem:[%s275 + $0x30] sm:$0xff] %vm1958, %v2114
      %2351 = vst.msk [vmem:[%s275 + $0x38] sm:$0xff] %vm1958, %v2117
      %2352 = vst.msk [vmem:[%s275 + $0x40] sm:$0xff] %vm1958, %v2122
      %2353 = vst.msk [vmem:[%s275 + $0x48] sm:$0xff] %vm1958, %v2125
      %2354 = vst.msk [vmem:[%s275 + $0x50] sm:$0xff] %vm1958, %v2130
      %2355 = vst.msk [vmem:[%s275 + $0x58] sm:$0xff] %vm1958, %v2133
      %2356 = vst.msk [vmem:[%s275 + $0x60] sm:$0xff] %vm1958, %v2138
      %2357 = vst.msk [vmem:[%s275 + $0x68] sm:$0xff] %vm1958, %v2141
      %2358 = vst.msk [vmem:[%s275 + $0x70] sm:$0xff] %vm1958, %v2146
      %2359 = vst.msk [vmem:[%s275 + $0x78] sm:$0xff] %vm1958, %v2149
      %2360 = vst.msk [vmem:[%s275 + $0x80] sm:$0xff] %vm1958, %v2154
      %2361 = vst.msk [vmem:[%s275 + $0x88] sm:$0xff] %vm1958, %v2157
      %2362 = vst.msk [vmem:[%s275 + $0x90] sm:$0xff] %vm1958, %v2162
      %2363 = vst.msk [vmem:[%s275 + $0x98] sm:$0xff] %vm1958, %v2165
      %2364 = vst.msk [vmem:[%s275 + $0xa0] sm:$0xff] %vm1958, %v2170
      %2365 = vst.msk [vmem:[%s275 + $0xa8] sm:$0xff] %vm1958, %v2173
      %2366 = vst.msk [vmem:[%s275 + $0xb0] sm:$0xff] %vm1958, %v2178
      %2367 = vst.msk [vmem:[%s275 + $0xb8] sm:$0xff] %vm1958, %v2181
      %2368 = vst.msk [vmem:[%s275 + $0xc0] sm:$0xff] %vm1958, %v2186
      %2369 = vst.msk [vmem:[%s275 + $0xc8] sm:$0xff] %vm1958, %v2189
      %2370 = vst.msk [vmem:[%s275 + $0xd0] sm:$0xff] %vm1958, %v2194
      %2371 = vst.msk [vmem:[%s275 + $0xd8] sm:$0xff] %vm1958, %v2197
      %2372 = vst.msk [vmem:[%s275 + $0xe0] sm:$0xff] %vm1958, %v2202
      %2373 = vst.msk [vmem:[%s275 + $0xe8] sm:$0xff] %vm1958, %v2205
      %2374 = vst.msk [vmem:[%s275 + $0xf0] sm:$0xff] %vm1958, %v2210
      %2375 = vst.msk [vmem:[%s275 + $0xf8] sm:$0xff] %vm1958, %v2213
      %2376 = vst.msk [vmem:[%s275 + $0x100] sm:$0xff] %vm1958, %v2218
      %2377 = vst.msk [vmem:[%s275 + $0x108] sm:$0xff] %vm1958, %v2221
      %2378 = vst.msk [vmem:[%s275 + $0x110] sm:$0xff] %vm1958, %v2226
      %2379 = vst.msk [vmem:[%s275 + $0x118] sm:$0xff] %vm1958, %v2229
      %2380 = vst.msk [vmem:[%s275 + $0x120] sm:$0xff] %vm1958, %v2234
      %2381 = vst.msk [vmem:[%s275 + $0x128] sm:$0xff] %vm1958, %v2237
      %2382 = vst.msk [vmem:[%s275 + $0x130] sm:$0xff] %vm1958, %v2242
      %2383 = vst.msk [vmem:[%s275 + $0x138] sm:$0xff] %vm1958, %v2245
      %2384 = vst.msk [vmem:[%s275 + $0x140] sm:$0xff] %vm1958, %v2250
      %2385 = vst.msk [vmem:[%s275 + $0x148] sm:$0xff] %vm1958, %v2253
      %2386 = vst.msk [vmem:[%s275 + $0x150] sm:$0xff] %vm1958, %v2258
      %2387 = vst.msk [vmem:[%s275 + $0x158] sm:$0xff] %vm1958, %v2261
      %2388 = vst.msk [vmem:[%s275 + $0x160] sm:$0xff] %vm1958, %v2266
      %2389 = vst.msk [vmem:[%s275 + $0x168] sm:$0xff] %vm1958, %v2269
      %2390 = vst.msk [vmem:[%s275 + $0x170] sm:$0xff] %vm1958, %v2274
      %2391 = vst.msk [vmem:[%s275 + $0x178] sm:$0xff] %vm1958, %v2277
      %2392 = vst.msk [vmem:[%s275 + $0x180] sm:$0xff] %vm1958, %v2282
      %2393 = vst.msk [vmem:[%s275 + $0x188] sm:$0xff] %vm1958, %v2285
      %2394 = vst.msk [vmem:[%s275 + $0x190] sm:$0xff] %vm1958, %v2290
      %2395 = vst.msk [vmem:[%s275 + $0x198] sm:$0xff] %vm1958, %v2293
      %2396 = vst.msk [vmem:[%s275 + $0x1a0] sm:$0xff] %vm1958, %v2298
      %2397 = vst.msk [vmem:[%s275 + $0x1a8] sm:$0xff] %vm1958, %v2301
      %2398 = vst.msk [vmem:[%s275 + $0x1b0] sm:$0xff] %vm1958, %v2306
      %2399 = vst.msk [vmem:[%s275 + $0x1b8] sm:$0xff] %vm1958, %v2309
      %2400 = vst.msk [vmem:[%s275 + $0x1c0] sm:$0xff] %vm1958, %v2314
      %2401 = vst.msk [vmem:[%s275 + $0x1c8] sm:$0xff] %vm1958, %v2317
      %2402 = vst.msk [vmem:[%s275 + $0x1d0] sm:$0xff] %vm1958, %v2322
      %2403 = vst.msk [vmem:[%s275 + $0x1d8] sm:$0xff] %vm1958, %v2325
      %2404 = vst.msk [vmem:[%s275 + $0x1e0] sm:$0xff] %vm1958, %v2330
      %2405 = vst.msk [vmem:[%s275 + $0x1e8] sm:$0xff] %vm1958, %v2333
      %2406 = vst.msk [vmem:[%s275 + $0x1f0] sm:$0xff] %vm1958, %v2338
      %2407 = vst.msk [vmem:[%s275 + $0x1f8] sm:$0xff] %vm1958, %v2341
      %s2408 = smul.u32 64, %s17
      %p2409 = scmp.lt.s32.totalorder %s2408, 127
      %s2410 = scalar_select %p2409, %s2408, 127
      %s2411 = smul.addr %s2410, 8
      %s2412 = scalar_lea.vmem %s6, %s2411
      // Predicated region
      $region45: #{tpu_custom_call.1} parent=43 // pred_check
        %p2413 = pneg %p171
      $region46: #{tpu_custom_call.1} parent=43 // pred_check_branch
        %2415 = sbr.rel (%p2413) target = $region48
      $region47: #{tpu_custom_call.1} parent=43 // pred_region
        %s2416 = smul.u32 64, %s17
      $region48: #{tpu_custom_call.1} parent=43 // pred_fallthru
        _
    $region44: #{tpu_custom_call.1} parent=5 // pred_fallthru
      _
    %p2417 = scmp.le.s32.totalorder 2, %s12
    // Predicated region
    $region49: #{tpu_custom_call.1} parent=5 // pred_check
      %p2418 = pneg %p2417
    $region50: #{tpu_custom_call.1} parent=5 // pred_check_branch
      %2420 = sbr.rel (%p2418) target = $region52
    $region51: #{tpu_custom_call.1} parent=5 // pred_region
      %s2421 = ssub.s32 %s12, 2
      // Predicated region
      $region53: #{tpu_custom_call.1} parent=51 // pred_check
        %p2422 = pneg %p177
      $region54: #{tpu_custom_call.1} parent=51 // pred_check_branch
        %2424 = sbr.rel (%p2422) target = $region56
      $region55: #{tpu_custom_call.1} parent=51 // pred_region
        %s2425 = smul.u32 64, %s18
        %p2426 = scmp.lt.s32.totalorder %s2425, 127
        %s2427 = scalar_select %p2426, %s2425, 127
        %s2428 = smul.addr %s2427, 8
        %s2429 = scalar_lea.vmem %s6, %s2428
      $region56: #{tpu_custom_call.1} parent=51 // pred_fallthru
        _
    $region52: #{tpu_custom_call.1} parent=5 // pred_fallthru
      _
  $region6: #{tpu_custom_call.1} parent=0 // loop_footer
    %s16 = sadd.s32 1, %s12
  $region7: #{tpu_custom_call.1} parent=0 // loop_footer_branch
    %11 = sbr.rel target = $region3
  $region8: #{tpu_custom_call.1} parent=0 // loop_exit
    _

</llo_original>
